<compile_context>
chip_gen: v5e
topology: v5e:2x2
jax: 0.10.0
libtpu: 0.0.40
codegen_flags: <defaults>
</compile_context>

<pallas_src>
import functools

import jax
import jax.numpy as jnp
from jax.experimental import pallas as pl
from jax.experimental.pallas import tpu as pltpu

LANE = 128


def _round_up(x, m):
    return ((x + m - 1) // m) * m


# ---------------------------------------------------------------------------
# Pallas kernels
# ---------------------------------------------------------------------------
def _matmul_bias_act_kernel(x_ref, w_ref, b_ref, o_ref, *, act):
    """Fused GEMM (bf16 x bf16 -> f32 acc) + bias + activation for one M-tile."""
    acc = jnp.dot(x_ref[...], w_ref[...], preferred_element_type=jnp.float32)
    acc = acc + b_ref[...]                       # (1, Np) broadcasts over rows
    if act == "relu":
        acc = jnp.maximum(acc, 0.0)
    elif act == "tanh":
        acc = jnp.tanh(acc)
    o_ref[...] = acc.astype(o_ref.dtype)


def _enc_head_reparam_kernel(x_ref, w_ref, b_ref, eps_ref, ml_ref, z_ref):
    """Fused mu/logvar GEMM + ReLU + reparametrization.

    Weight columns [0, half) hold the mu head, [half, 2*half) the logvar head
    (each head padded to half=128 lanes so all slices are vreg-tile aligned)."""
    acc = jnp.dot(x_ref[...], w_ref[...], preferred_element_type=jnp.float32)
    acc = jnp.maximum(acc + b_ref[...], 0.0)     # both heads use ReLU (as in ref)
    ml_ref[...] = acc
    half = acc.shape[1] // 2
    mu = acc[:, :half]
    logvar = acc[:, half:]
    z_ref[...] = eps_ref[...] * jnp.exp(0.5 * logvar) + mu


def _compiler_params():
    # 32 MiB scoped VMEM is safe on v5e (128 MiB), v6e (128 MiB) and v7x (64 MiB).
    return pltpu.CompilerParams(
        dimension_semantics=("parallel",),
        vmem_limit_bytes=32 * 1024 * 1024,
    )


def _pad_rows(x, mp):
    m = x.shape[0]
    return x if m == mp else jnp.pad(x, ((0, mp - m), (0, 0)))


def matmul_bias_act(x, w, b, act, tm=256):
    """x: (M, K) bf16, w: (K, Np) bf16 with Np % 128 == 0, b: (1, Np) f32."""
    M, K = x.shape
    Np = w.shape[1]
    tm = min(tm, _round_up(M, 8))
    Mp = _round_up(M, tm)
    out = pl.pallas_call(
        functools.partial(_matmul_bias_act_kernel, act=act),
        out_shape=jax.ShapeDtypeStruct((Mp, Np), jnp.float32),
        grid=(Mp // tm,),
        in_specs=[
            pl.BlockSpec((tm, K), lambda i: (i, 0)),
            pl.BlockSpec((K, Np), lambda i: (0, 0)),
            pl.BlockSpec((1, Np), lambda i: (0, 0)),
        ],
        out_specs=pl.BlockSpec((tm, Np), lambda i: (i, 0)),
        compiler_params=_compiler_params(),
    )(_pad_rows(x, Mp), w, b)
    return out[:M] if Mp != M else out


def enc_head_reparam_call(x, w, b, eps, tm=256):
    """x: (M, K) bf16; w: (K, 2*half) bf16; b: (1, 2*half) f32; eps: (M, half) f32."""
    M, K = x.shape
    Np = w.shape[1]
    half = Np // 2
    tm = min(tm, _round_up(M, 8))
    Mp = _round_up(M, tm)
    ml, z = pl.pallas_call(
        _enc_head_reparam_kernel,
        out_shape=(
            jax.ShapeDtypeStruct((Mp, Np), jnp.float32),
            jax.ShapeDtypeStruct((Mp, half), jnp.float32),
        ),
        grid=(Mp // tm,),
        in_specs=[
            pl.BlockSpec((tm, K), lambda i: (i, 0)),
            pl.BlockSpec((K, Np), lambda i: (0, 0)),
            pl.BlockSpec((1, Np), lambda i: (0, 0)),
            pl.BlockSpec((tm, half), lambda i: (i, 0)),
        ],
        out_specs=(
            pl.BlockSpec((tm, Np), lambda i: (i, 0)),
            pl.BlockSpec((tm, half), lambda i: (i, 0)),
        ),
        compiler_params=_compiler_params(),
    )(_pad_rows(x, Mp), w, b, _pad_rows(eps, Mp))
    if Mp != M:
        ml, z = ml[:M], z[:M]
    return ml, z


# ---------------------------------------------------------------------------
# Conv / ConvTranspose glue (patch extraction in XLA, GEMM in Pallas)
# ---------------------------------------------------------------------------
# TODO(synk): im2col patches are still materialized by XLA in HBM (and the encoder
# is still 3 separate launches); folding the patch gather into the kernel via
# memory_space=pl.ANY + pl.ds would remove that traffic for large images.
def _im2col(x_nhwc, k, stride, pad):
    """(N, H, W, C) -> (N*Ho*Wo, k*k*C) patches, element order (kh, kw, c)."""
    N, H, W, C = x_nhwc.shape
    xp = jnp.pad(x_nhwc, ((0, 0), (pad, pad), (pad, pad), (0, 0)))
    Ho = (H + 2 * pad - k) // stride + 1
    Wo = (W + 2 * pad - k) // stride + 1
    cols = []
    for di in range(k):
        for dj in range(k):
            cols.append(
                xp[:, di:di + Ho * stride:stride, dj:dj + Wo * stride:stride, :])
    patches = jnp.stack(cols, axis=3)            # (N, Ho, Wo, k*k, C)
    return patches.reshape(N * Ho * Wo, k * k * C), Ho, Wo


def conv2d_fwd(x_nhwc, w2d, b2d, *, cout, k, stride, pad, act):
    N = x_nhwc.shape[0]
    patches, Ho, Wo = _im2col(x_nhwc, k, stride, pad)
    out = matmul_bias_act(patches.astype(jnp.bfloat16), w2d, b2d, act)
    return out[:, :cout].reshape(N, Ho, Wo, cout)


def enc_heads_reparam(h_nhwc, w2d, b2d, eps_key, *, cout, k, stride, pad):
    """One GEMM for both mu & logvar heads; reparam fused in the kernel epilogue."""
    N = h_nhwc.shape[0]
    half = w2d.shape[1] // 2
    patches, Ho, Wo = _im2col(h_nhwc, k, stride, pad)
    M = patches.shape[0]
    eps = jax.random.normal(eps_key, (M, cout), jnp.float32)   # eps ~ N(0, 1)
    eps = jnp.pad(eps, ((0, 0), (0, half - cout)))
    ml, z = enc_head_reparam_call(patches.astype(jnp.bfloat16), w2d, b2d, eps)
    mu = ml[:, :cout].reshape(N, Ho, Wo, cout)
    logvar = ml[:, half:half + cout].reshape(N, Ho, Wo, cout)
    zz = z[:, :cout].reshape(N, Ho, Wo, cout)
    return mu, logvar, zz


def conv_transpose2d_fwd(x_nhwc, w2d, b2d, *, cout, act):
    """ConvTranspose2d(k=4, stride=2, padding=1) as ONE 3x3/stride-1 GEMM whose
    output channels hold the 4 output phases, followed by depth-to-space."""
    N, H, W, _ = x_nhwc.shape
    patches, _, _ = _im2col(x_nhwc, 3, 1, 1)                  # (N*H*W, 9*Cin)
    out = matmul_bias_act(patches.astype(jnp.bfloat16), w2d, b2d, act)
    out = out[:, :4 * cout].reshape(N, H, W, 2, 2, cout)      # (..., r, c, cout)
    out = jnp.transpose(out, (0, 1, 3, 2, 4, 5)).reshape(N, 2 * H, 2 * W, cout)
    return out


# ---------------------------------------------------------------------------
# Parameters (PyTorch layout) + one-time GEMM-layout preparation
# ---------------------------------------------------------------------------
def init_params(key):
    def w(k, shape, scale=0.05):
        return scale * jax.random.normal(k, shape, jnp.float32)

    ks = jax.random.split(key, 14)
    return {
        "conv1_w": w(ks[0], (12, 3, 4, 4)),   "conv1_b": w(ks[1], (12,)),
        "conv2_w": w(ks[2], (24, 12, 4, 4)),  "conv2_b": w(ks[3], (24,)),
        "enc1_w":  w(ks[4], (48, 24, 4, 4)),  "enc1_b":  w(ks[5], (48,)),
        "enc2_w":  w(ks[6], (48, 24, 4, 4)),  "enc2_b":  w(ks[7], (48,)),
        # ConvTranspose2d weights are (Cin, Cout, kH, kW)
        "dec1_w":  w(ks[8], (48, 24, 4, 4)),  "dec1_b":  w(ks[9], (24,)),
        "dec2_w":  w(ks[10], (24, 12, 4, 4)), "dec2_b":  w(ks[11], (12,)),
        "dec3_w":  w(ks[12], (12, 3, 4, 4)),  "dec3_b":  w(ks[13], (3,)),
    }


def _prep_conv(w_oihw, b):
    Cout, Cin, kH, kW = w_oihw.shape
    w2d = jnp.transpose(w_oihw, (2, 3, 1, 0)).reshape(kH * kW * Cin, Cout)
    Np = _round_up(Cout, LANE)
    w2d = jnp.pad(w2d, ((0, 0), (0, Np - Cout))).astype(jnp.bfloat16)
    b2d = jnp.pad(b.reshape(1, Cout), ((0, 0), (0, Np - Cout))).astype(jnp.float32)
    return w2d, b2d


def _prep_enc_heads(w_mu, b_mu, w_lv, b_lv):
    Cout, Cin, kH, kW = w_mu.shape
    K = kH * kW * Cin
    half = _round_up(Cout, LANE)
    wm = jnp.transpose(w_mu, (2, 3, 1, 0)).reshape(K, Cout)
    wl = jnp.transpose(w_lv, (2, 3, 1, 0)).reshape(K, Cout)
    w = jnp.zeros((K, 2 * half), jnp.float32)
    w = w.at[:, :Cout].set(wm).at[:, half:half + Cout].set(wl)
    b = jnp.zeros((1, 2 * half), jnp.float32)
    b = b.at[0, :Cout].set(b_mu).at[0, half:half + Cout].set(b_lv)
    return w.astype(jnp.bfloat16), b


def _prep_deconv(w_iohw, b):
    """ConvTranspose2d weight (Cin, Cout, 4, 4) -> (9*Cin, pad128(4*Cout)) GEMM weight.

    For output pixel (2i+r, 2j+c) the transposed conv uses x[i+dh-1, j+dw-1] with
    kernel tap (kh, kw) = (r + 3 - 2*dh, c + 3 - 2*dw); only valid taps are kept,
    everything else stays zero (no zero-dilated input required)."""
    Cin, Cout, kH, kW = w_iohw.shape
    assert kH == 4 and kW == 4, "phase decomposition assumes k=4, stride=2, pad=1"
    wg = jnp.zeros((3, 3, Cin, 4 * Cout), jnp.float32)
    for dh in range(3):
        for dw in range(3):
            for r in range(2):
                for c in range(2):
                    kh = r + 3 - 2 * dh
                    kw = c + 3 - 2 * dw
                    if 0 <= kh < 4 and 0 <= kw < 4:
                        col = (r * 2 + c) * Cout
                        wg = wg.at[dh, dw, :, col:col + Cout].set(w_iohw[:, :, kh, kw])
    Np = _round_up(4 * Cout, LANE)
    w2d = jnp.pad(wg.reshape(9 * Cin, 4 * Cout), ((0, 0), (0, Np - 4 * Cout)))
    b2d = jnp.pad(jnp.tile(b, 4).reshape(1, 4 * Cout), ((0, 0), (0, Np - 4 * Cout)))
    return w2d.astype(jnp.bfloat16), b2d.astype(jnp.float32)


def prepare_params(raw):
    """Precompute GEMM-layout (transposed, lane-padded, bf16) weights ONCE."""
    p = {}
    p["conv1_w"], p["conv1_b"] = _prep_conv(raw["conv1_w"], raw["conv1_b"])
    p["conv2_w"], p["conv2_b"] = _prep_conv(raw["conv2_w"], raw["conv2_b"])
    p["enc_w"], p["enc_b"] = _prep_enc_heads(
        raw["enc1_w"], raw["enc1_b"], raw["enc2_w"], raw["enc2_b"])
    p["dec1_w"], p["dec1_b"] = _prep_deconv(raw["dec1_w"], raw["dec1_b"])
    p["dec2_w"], p["dec2_b"] = _prep_deconv(raw["dec2_w"], raw["dec2_b"])
    p["dec3_w"], p["dec3_b"] = _prep_deconv(raw["dec3_w"], raw["dec3_b"])
    return p


# ---------------------------------------------------------------------------
# Forward pass (matches PyTorch VAE.forward semantics)
# ---------------------------------------------------------------------------
def vae_forward(params, x_nchw, eps_key):
    x = jnp.transpose(x_nchw, (0, 2, 3, 1)).astype(jnp.float32)   # NCHW -> NHWC

    # encoder
    h = conv2d_fwd(x, params["conv1_w"], params["conv1_b"],
                   cout=12, k=4, stride=2, pad=1, act="relu")
    h = conv2d_fwd(h, params["conv2_w"], params["conv2_b"],
                   cout=24, k=4, stride=2, pad=1, act="relu")

    # fused mu/logvar heads + reparametrization (stays in NHWC)
    mu, logvar, z = enc_heads_reparam(h, params["enc_w"], params["enc_b"], eps_key,
                                      cout=48, k=4, stride=2, pad=1)

    # decoder (transposed convs via phase decomposition, one GEMM per layer)
    d = conv_transpose2d_fwd(z, params["dec1_w"], params["dec1_b"], cout=24, act="relu")
    d = conv_transpose2d_fwd(d, params["dec2_w"], params["dec2_b"], cout=12, act="relu")
    d = conv_transpose2d_fwd(d, params["dec3_w"], params["dec3_b"], cout=3, act="tanh")

    recon = jnp.transpose(d, (0, 3, 1, 2))          # back to NCHW
    mu_nchw = jnp.transpose(mu, (0, 3, 1, 2))
    lv_nchw = jnp.transpose(logvar, (0, 3, 1, 2))
    return recon, mu_nchw, lv_nchw


if __name__ == "__main__":
    key = jax.random.PRNGKey(0)
    pkey, xkey, ekey = jax.random.split(key, 3)

    raw_params = init_params(pkey)
    params = prepare_params(raw_params)             # one-time GEMM-layout prep
    x = jax.random.normal(xkey, (2, 3, 16, 16), jnp.float32)   # NCHW, small

    recon, mu, logvar = jax.jit(vae_forward)(params, x, ekey)
    jax.block_until_ready((recon, mu, logvar))

    assert recon.shape == (2, 3, 16, 16)
    assert mu.shape == (2, 48, 2, 2)
    assert logvar.shape == (2, 48, 2, 2)
    assert bool(jnp.all(jnp.isfinite(recon)))
    print("KERNEL_OK")
</pallas_src>

<mosaic_0001>
module attributes {stable_mosaic.version = 11 : i64} {
  func.func @_matmul_bias_act_kernel(%arg0: i32, %arg1: memref<128x48xbf16, #tpu.memory_space<vmem>>, %arg2: memref<48x128xbf16, #tpu.memory_space<vmem>>, %arg3: memref<1x128xf32, #tpu.memory_space<vmem>>, %arg4: memref<128x128xf32, #tpu.memory_space<vmem>>) attributes {dimension_semantics = [#tpu.dimension_semantics<parallel>], iteration_bounds = array<i64: 1>, scalar_prefetch = 0 : i64, scratch_operands = 0 : i64, tpu.core_type = #tpu.core_type<tc>, window_params = [{transform_indices = @transform_0, window_bounds = array<i64: 128, 48>}, {pipeline_mode = #tpu.pipeline_mode<synchronous>, transform_indices = @transform_1, window_bounds = array<i64: 48, 128>}, {pipeline_mode = #tpu.pipeline_mode<synchronous>, transform_indices = @transform_2, window_bounds = array<i64: 1, 128>}, {transform_indices = @transform_3, window_bounds = array<i64: 128, 128>}]} {
    %c0 = arith.constant 0 : index
    %c0_0 = arith.constant 0 : index
    %0 = vector.load %arg1[%c0, %c0_0] : memref<128x48xbf16, #tpu.memory_space<vmem>>, vector<128x48xbf16>
    %c0_1 = arith.constant 0 : index
    %c0_2 = arith.constant 0 : index
    %1 = vector.load %arg2[%c0_1, %c0_2] : memref<48x128xbf16, #tpu.memory_space<vmem>>, vector<48x128xbf16>
    %cst = arith.constant dense<0.000000e+00> : vector<128x128xf32>
    %2 = tpu.matmul %0, %1, %cst {dimension_numbers = #tpu.dot_dimension_numbers<[1], [0], [0], [1], [0, 0, 1, 1], [], []>} : vector<128x48xbf16>, vector<48x128xbf16>, vector<128x128xf32> -> vector<128x128xf32>
    %c0_3 = arith.constant 0 : index
    %c0_4 = arith.constant 0 : index
    %3 = vector.load %arg3[%c0_3, %c0_4] : memref<1x128xf32, #tpu.memory_space<vmem>>, vector<1x128xf32>
    %4 = vector.broadcast %3 : vector<1x128xf32> to vector<128x128xf32>
    %5 = arith.addf %2, %4 : vector<128x128xf32>
    %cst_5 = arith.constant 0.000000e+00 : f32
    %6 = vector.broadcast %cst_5 : f32 to vector<128x128xf32>
    %7 = arith.maximumf %5, %6 : vector<128x128xf32>
    %c0_6 = arith.constant 0 : index
    %c0_7 = arith.constant 0 : index
    %8 = vector.load %arg4[%c0_6, %c0_7] : memref<128x128xf32, #tpu.memory_space<vmem>>, vector<128x128xf32>
    tpu.vector_store %arg4[%c0_6, %c0_7], %7 {strides = array<i32>} : memref<128x128xf32, #tpu.memory_space<vmem>>, vector<128x128xf32>,
    return
  }
  func.func @transform_0(%arg0: i32) -> (i32, i32) {
    %c0_i32 = arith.constant 0 : i32
    %c0_i32_0 = arith.constant 0 : i32
    return %arg0, %c0_i32 : i32, i32
  }
  func.func @transform_1(%arg0: i32) -> (i32, i32) {
    %c0_i32 = arith.constant 0 : i32
    %c0_i32_0 = arith.constant 0 : i32
    %c0_i32_1 = arith.constant 0 : i32
    return %c0_i32, %c0_i32_0 : i32, i32
  }
  func.func @transform_2(%arg0: i32) -> (i32, i32) {
    %c0_i32 = arith.constant 0 : i32
    %c0_i32_0 = arith.constant 0 : i32
    %c0_i32_1 = arith.constant 0 : i32
    return %c0_i32, %c0_i32_0 : i32, i32
  }
  func.func @transform_3(%arg0: i32) -> (i32, i32) {
    %c0_i32 = arith.constant 0 : i32
    %c0_i32_0 = arith.constant 0 : i32
    return %arg0, %c0_i32 : i32, i32
  }
}

module attributes {stable_mosaic.version = 11 : i64} {
  func.func @_matmul_bias_act_kernel(%arg0: i32, %arg1: memref<32x192xbf16, #tpu.memory_space<vmem>>, %arg2: memref<192x128xbf16, #tpu.memory_space<vmem>>, %arg3: memref<1x128xf32, #tpu.memory_space<vmem>>, %arg4: memref<32x128xf32, #tpu.memory_space<vmem>>) attributes {dimension_semantics = [#tpu.dimension_semantics<parallel>], iteration_bounds = array<i64: 1>, scalar_prefetch = 0 : i64, scratch_operands = 0 : i64, tpu.core_type = #tpu.core_type<tc>, window_params = [{transform_indices = @transform_0, window_bounds = array<i64: 32, 192>}, {pipeline_mode = #tpu.pipeline_mode<synchronous>, transform_indices = @transform_1, window_bounds = array<i64: 192, 128>}, {pipeline_mode = #tpu.pipeline_mode<synchronous>, transform_indices = @transform_2, window_bounds = array<i64: 1, 128>}, {transform_indices = @transform_3, window_bounds = array<i64: 32, 128>}]} {
    %c0 = arith.constant 0 : index
    %c0_0 = arith.constant 0 : index
    %0 = vector.load %arg1[%c0, %c0_0] : memref<32x192xbf16, #tpu.memory_space<vmem>>, vector<32x192xbf16>
    %c0_1 = arith.constant 0 : index
    %c0_2 = arith.constant 0 : index
    %1 = vector.load %arg2[%c0_1, %c0_2] : memref<192x128xbf16, #tpu.memory_space<vmem>>, vector<192x128xbf16>
    %cst = arith.constant dense<0.000000e+00> : vector<32x128xf32>
    %2 = tpu.matmul %0, %1, %cst {dimension_numbers = #tpu.dot_dimension_numbers<[1], [0], [0], [1], [0, 0, 1, 1], [], []>} : vector<32x192xbf16>, vector<192x128xbf16>, vector<32x128xf32> -> vector<32x128xf32>
    %c0_3 = arith.constant 0 : index
    %c0_4 = arith.constant 0 : index
    %3 = vector.load %arg3[%c0_3, %c0_4] : memref<1x128xf32, #tpu.memory_space<vmem>>, vector<1x128xf32>
    %4 = vector.broadcast %3 : vector<1x128xf32> to vector<32x128xf32>
    %5 = arith.addf %2, %4 : vector<32x128xf32>
    %cst_5 = arith.constant 0.000000e+00 : f32
    %6 = vector.broadcast %cst_5 : f32 to vector<32x128xf32>
    %7 = arith.maximumf %5, %6 : vector<32x128xf32>
    %c0_6 = arith.constant 0 : index
    %c0_7 = arith.constant 0 : index
    %8 = vector.load %arg4[%c0_6, %c0_7] : memref<32x128xf32, #tpu.memory_space<vmem>>, vector<32x128xf32>
    tpu.vector_store %arg4[%c0_6, %c0_7], %7 {strides = array<i32>} : memref<32x128xf32, #tpu.memory_space<vmem>>, vector<32x128xf32>,
    return
  }
  func.func @transform_0(%arg0: i32) -> (i32, i32) {
    %c0_i32 = arith.constant 0 : i32
    %c0_i32_0 = arith.constant 0 : i32
    return %arg0, %c0_i32 : i32, i32
  }
  func.func @transform_1(%arg0: i32) -> (i32, i32) {
    %c0_i32 = arith.constant 0 : i32
    %c0_i32_0 = arith.constant 0 : i32
    %c0_i32_1 = arith.constant 0 : i32
    return %c0_i32, %c0_i32_0 : i32, i32
  }
  func.func @transform_2(%arg0: i32) -> (i32, i32) {
    %c0_i32 = arith.constant 0 : i32
    %c0_i32_0 = arith.constant 0 : i32
    %c0_i32_1 = arith.constant 0 : i32
    return %c0_i32, %c0_i32_0 : i32, i32
  }
  func.func @transform_3(%arg0: i32) -> (i32, i32) {
    %c0_i32 = arith.constant 0 : i32
    %c0_i32_0 = arith.constant 0 : i32
    return %arg0, %c0_i32 : i32, i32
  }
}

module attributes {stable_mosaic.version = 11 : i64} {
  func.func @_enc_head_reparam_kernel(%arg0: i32, %arg1: memref<8x384xbf16, #tpu.memory_space<vmem>>, %arg2: memref<384x256xbf16, #tpu.memory_space<vmem>>, %arg3: memref<1x256xf32, #tpu.memory_space<vmem>>, %arg4: memref<8x128xf32, #tpu.memory_space<vmem>>, %arg5: memref<8x256xf32, #tpu.memory_space<vmem>>, %arg6: memref<8x128xf32, #tpu.memory_space<vmem>>) attributes {dimension_semantics = [#tpu.dimension_semantics<parallel>], iteration_bounds = array<i64: 1>, scalar_prefetch = 0 : i64, scratch_operands = 0 : i64, tpu.core_type = #tpu.core_type<tc>, window_params = [{transform_indices = @transform_0, window_bounds = array<i64: 8, 384>}, {pipeline_mode = #tpu.pipeline_mode<synchronous>, transform_indices = @transform_1, window_bounds = array<i64: 384, 256>}, {pipeline_mode = #tpu.pipeline_mode<synchronous>, transform_indices = @transform_2, window_bounds = array<i64: 1, 256>}, {transform_indices = @transform_3, window_bounds = array<i64: 8, 128>}, {transform_indices = @transform_4, window_bounds = array<i64: 8, 256>}, {transform_indices = @transform_5, window_bounds = array<i64: 8, 128>}]} {
    %c0 = arith.constant 0 : index
    %c0_0 = arith.constant 0 : index
    %0 = vector.load %arg1[%c0, %c0_0] : memref<8x384xbf16, #tpu.memory_space<vmem>>, vector<8x384xbf16>
    %c0_1 = arith.constant 0 : index
    %c0_2 = arith.constant 0 : index
    %1 = vector.load %arg2[%c0_1, %c0_2] : memref<384x256xbf16, #tpu.memory_space<vmem>>, vector<384x256xbf16>
    %cst = arith.constant dense<0.000000e+00> : vector<8x256xf32>
    %2 = tpu.matmul %0, %1, %cst {dimension_numbers = #tpu.dot_dimension_numbers<[1], [0], [0], [1], [0, 0, 1, 1], [], []>} : vector<8x384xbf16>, vector<384x256xbf16>, vector<8x256xf32> -> vector<8x256xf32>
    %c0_3 = arith.constant 0 : index
    %c0_4 = arith.constant 0 : index
    %3 = vector.load %arg3[%c0_3, %c0_4] : memref<1x256xf32, #tpu.memory_space<vmem>>, vector<1x256xf32>
    %4 = vector.broadcast %3 : vector<1x256xf32> to vector<8x256xf32>
    %5 = arith.addf %2, %4 : vector<8x256xf32>
    %cst_5 = arith.constant 0.000000e+00 : f32
    %6 = vector.broadcast %cst_5 : f32 to vector<8x256xf32>
    %7 = arith.maximumf %5, %6 : vector<8x256xf32>
    %c0_6 = arith.constant 0 : index
    %c0_7 = arith.constant 0 : index
    %8 = vector.load %arg5[%c0_6, %c0_7] : memref<8x256xf32, #tpu.memory_space<vmem>>, vector<8x256xf32>
    tpu.vector_store %arg5[%c0_6, %c0_7], %7 {strides = array<i32>} : memref<8x256xf32, #tpu.memory_space<vmem>>, vector<8x256xf32>,
    %9 = vector.extract_strided_slice %7 {offsets = [0, 0], sizes = [8, 128], strides = [1, 1]} : vector<8x256xf32> to vector<8x128xf32>
    %10 = vector.extract_strided_slice %7 {offsets = [0, 128], sizes = [8, 128], strides = [1, 1]} : vector<8x256xf32> to vector<8x128xf32>
    %c0_8 = arith.constant 0 : index
    %c0_9 = arith.constant 0 : index
    %11 = vector.load %arg4[%c0_8, %c0_9] : memref<8x128xf32, #tpu.memory_space<vmem>>, vector<8x128xf32>
    %cst_10 = arith.constant 5.000000e-01 : f32
    %12 = vector.broadcast %cst_10 : f32 to vector<8x128xf32>
    %13 = arith.mulf %12, %10 : vector<8x128xf32>
    %14 = math.exp %13 : vector<8x128xf32>
    %15 = arith.mulf %11, %14 : vector<8x128xf32>
    %16 = arith.addf %15, %9 : vector<8x128xf32>
    %c0_11 = arith.constant 0 : index
    %c0_12 = arith.constant 0 : index
    %17 = vector.load %arg6[%c0_11, %c0_12] : memref<8x128xf32, #tpu.memory_space<vmem>>, vector<8x128xf32>
    tpu.vector_store %arg6[%c0_11, %c0_12], %16 {strides = array<i32>} : memref<8x128xf32, #tpu.memory_space<vmem>>, vector<8x128xf32>,
    return
  }
  func.func @transform_0(%arg0: i32) -> (i32, i32) {
    %c0_i32 = arith.constant 0 : i32
    %c0_i32_0 = arith.constant 0 : i32
    return %arg0, %c0_i32 : i32, i32
  }
  func.func @transform_1(%arg0: i32) -> (i32, i32) {
    %c0_i32 = arith.constant 0 : i32
    %c0_i32_0 = arith.constant 0 : i32
    %c0_i32_1 = arith.constant 0 : i32
    return %c0_i32, %c0_i32_0 : i32, i32
  }
  func.func @transform_2(%arg0: i32) -> (i32, i32) {
    %c0_i32 = arith.constant 0 : i32
    %c0_i32_0 = arith.constant 0 : i32
    %c0_i32_1 = arith.constant 0 : i32
    return %c0_i32, %c0_i32_0 : i32, i32
  }
  func.func @transform_3(%arg0: i32) -> (i32, i32) {
    %c0_i32 = arith.constant 0 : i32
    %c0_i32_0 = arith.constant 0 : i32
    return %arg0, %c0_i32 : i32, i32
  }
  func.func @transform_4(%arg0: i32) -> (i32, i32) {
    %c0_i32 = arith.constant 0 : i32
    %c0_i32_0 = arith.constant 0 : i32
    return %arg0, %c0_i32 : i32, i32
  }
  func.func @transform_5(%arg0: i32) -> (i32, i32) {
    %c0_i32 = arith.constant 0 : i32
    %c0_i32_0 = arith.constant 0 : i32
    return %arg0, %c0_i32 : i32, i32
  }
}

module attributes {stable_mosaic.version = 11 : i64} {
  func.func @_matmul_bias_act_kernel(%arg0: i32, %arg1: memref<8x432xbf16, #tpu.memory_space<vmem>>, %arg2: memref<432x128xbf16, #tpu.memory_space<vmem>>, %arg3: memref<1x128xf32, #tpu.memory_space<vmem>>, %arg4: memref<8x128xf32, #tpu.memory_space<vmem>>) attributes {dimension_semantics = [#tpu.dimension_semantics<parallel>], iteration_bounds = array<i64: 1>, scalar_prefetch = 0 : i64, scratch_operands = 0 : i64, tpu.core_type = #tpu.core_type<tc>, window_params = [{transform_indices = @transform_0, window_bounds = array<i64: 8, 432>}, {pipeline_mode = #tpu.pipeline_mode<synchronous>, transform_indices = @transform_1, window_bounds = array<i64: 432, 128>}, {pipeline_mode = #tpu.pipeline_mode<synchronous>, transform_indices = @transform_2, window_bounds = array<i64: 1, 128>}, {transform_indices = @transform_3, window_bounds = array<i64: 8, 128>}]} {
    %c0 = arith.constant 0 : index
    %c0_0 = arith.constant 0 : index
    %0 = vector.load %arg1[%c0, %c0_0] : memref<8x432xbf16, #tpu.memory_space<vmem>>, vector<8x432xbf16>
    %c0_1 = arith.constant 0 : index
    %c0_2 = arith.constant 0 : index
    %1 = vector.load %arg2[%c0_1, %c0_2] : memref<432x128xbf16, #tpu.memory_space<vmem>>, vector<432x128xbf16>
    %cst = arith.constant dense<0.000000e+00> : vector<8x128xf32>
    %2 = tpu.matmul %0, %1, %cst {dimension_numbers = #tpu.dot_dimension_numbers<[1], [0], [0], [1], [0, 0, 1, 1], [], []>} : vector<8x432xbf16>, vector<432x128xbf16>, vector<8x128xf32> -> vector<8x128xf32>
    %c0_3 = arith.constant 0 : index
    %c0_4 = arith.constant 0 : index
    %3 = vector.load %arg3[%c0_3, %c0_4] : memref<1x128xf32, #tpu.memory_space<vmem>>, vector<1x128xf32>
    %4 = vector.broadcast %3 : vector<1x128xf32> to vector<8x128xf32>
    %5 = arith.addf %2, %4 : vector<8x128xf32>
    %cst_5 = arith.constant 0.000000e+00 : f32
    %6 = vector.broadcast %cst_5 : f32 to vector<8x128xf32>
    %7 = arith.maximumf %5, %6 : vector<8x128xf32>
    %c0_6 = arith.constant 0 : index
    %c0_7 = arith.constant 0 : index
    %8 = vector.load %arg4[%c0_6, %c0_7] : memref<8x128xf32, #tpu.memory_space<vmem>>, vector<8x128xf32>
    tpu.vector_store %arg4[%c0_6, %c0_7], %7 {strides = array<i32>} : memref<8x128xf32, #tpu.memory_space<vmem>>, vector<8x128xf32>,
    return
  }
  func.func @transform_0(%arg0: i32) -> (i32, i32) {
    %c0_i32 = arith.constant 0 : i32
    %c0_i32_0 = arith.constant 0 : i32
    return %arg0, %c0_i32 : i32, i32
  }
  func.func @transform_1(%arg0: i32) -> (i32, i32) {
    %c0_i32 = arith.constant 0 : i32
    %c0_i32_0 = arith.constant 0 : i32
    %c0_i32_1 = arith.constant 0 : i32
    return %c0_i32, %c0_i32_0 : i32, i32
  }
  func.func @transform_2(%arg0: i32) -> (i32, i32) {
    %c0_i32 = arith.constant 0 : i32
    %c0_i32_0 = arith.constant 0 : i32
    %c0_i32_1 = arith.constant 0 : i32
    return %c0_i32, %c0_i32_0 : i32, i32
  }
  func.func @transform_3(%arg0: i32) -> (i32, i32) {
    %c0_i32 = arith.constant 0 : i32
    %c0_i32_0 = arith.constant 0 : i32
    return %arg0, %c0_i32 : i32, i32
  }
}

module attributes {stable_mosaic.version = 11 : i64} {
  func.func @_matmul_bias_act_kernel(%arg0: i32, %arg1: memref<32x216xbf16, #tpu.memory_space<vmem>>, %arg2: memref<216x128xbf16, #tpu.memory_space<vmem>>, %arg3: memref<1x128xf32, #tpu.memory_space<vmem>>, %arg4: memref<32x128xf32, #tpu.memory_space<vmem>>) attributes {dimension_semantics = [#tpu.dimension_semantics<parallel>], iteration_bounds = array<i64: 1>, scalar_prefetch = 0 : i64, scratch_operands = 0 : i64, tpu.core_type = #tpu.core_type<tc>, window_params = [{transform_indices = @transform_0, window_bounds = array<i64: 32, 216>}, {pipeline_mode = #tpu.pipeline_mode<synchronous>, transform_indices = @transform_1, window_bounds = array<i64: 216, 128>}, {pipeline_mode = #tpu.pipeline_mode<synchronous>, transform_indices = @transform_2, window_bounds = array<i64: 1, 128>}, {transform_indices = @transform_3, window_bounds = array<i64: 32, 128>}]} {
    %c0 = arith.constant 0 : index
    %c0_0 = arith.constant 0 : index
    %0 = vector.load %arg1[%c0, %c0_0] : memref<32x216xbf16, #tpu.memory_space<vmem>>, vector<32x216xbf16>
    %c0_1 = arith.constant 0 : index
    %c0_2 = arith.constant 0 : index
    %1 = vector.load %arg2[%c0_1, %c0_2] : memref<216x128xbf16, #tpu.memory_space<vmem>>, vector<216x128xbf16>
    %cst = arith.constant dense<0.000000e+00> : vector<32x128xf32>
    %2 = tpu.matmul %0, %1, %cst {dimension_numbers = #tpu.dot_dimension_numbers<[1], [0], [0], [1], [0, 0, 1, 1], [], []>} : vector<32x216xbf16>, vector<216x128xbf16>, vector<32x128xf32> -> vector<32x128xf32>
    %c0_3 = arith.constant 0 : index
    %c0_4 = arith.constant 0 : index
    %3 = vector.load %arg3[%c0_3, %c0_4] : memref<1x128xf32, #tpu.memory_space<vmem>>, vector<1x128xf32>
    %4 = vector.broadcast %3 : vector<1x128xf32> to vector<32x128xf32>
    %5 = arith.addf %2, %4 : vector<32x128xf32>
    %cst_5 = arith.constant 0.000000e+00 : f32
    %6 = vector.broadcast %cst_5 : f32 to vector<32x128xf32>
    %7 = arith.maximumf %5, %6 : vector<32x128xf32>
    %c0_6 = arith.constant 0 : index
    %c0_7 = arith.constant 0 : index
    %8 = vector.load %arg4[%c0_6, %c0_7] : memref<32x128xf32, #tpu.memory_space<vmem>>, vector<32x128xf32>
    tpu.vector_store %arg4[%c0_6, %c0_7], %7 {strides = array<i32>} : memref<32x128xf32, #tpu.memory_space<vmem>>, vector<32x128xf32>,
    return
  }
  func.func @transform_0(%arg0: i32) -> (i32, i32) {
    %c0_i32 = arith.constant 0 : i32
    %c0_i32_0 = arith.constant 0 : i32
    return %arg0, %c0_i32 : i32, i32
  }
  func.func @transform_1(%arg0: i32) -> (i32, i32) {
    %c0_i32 = arith.constant 0 : i32
    %c0_i32_0 = arith.constant 0 : i32
    %c0_i32_1 = arith.constant 0 : i32
    return %c0_i32, %c0_i32_0 : i32, i32
  }
  func.func @transform_2(%arg0: i32) -> (i32, i32) {
    %c0_i32 = arith.constant 0 : i32
    %c0_i32_0 = arith.constant 0 : i32
    %c0_i32_1 = arith.constant 0 : i32
    return %c0_i32, %c0_i32_0 : i32, i32
  }
  func.func @transform_3(%arg0: i32) -> (i32, i32) {
    %c0_i32 = arith.constant 0 : i32
    %c0_i32_0 = arith.constant 0 : i32
    return %arg0, %c0_i32 : i32, i32
  }
}

module attributes {stable_mosaic.version = 11 : i64} {
  func.func @_matmul_bias_act_kernel(%arg0: i32, %arg1: memref<128x108xbf16, #tpu.memory_space<vmem>>, %arg2: memref<108x128xbf16, #tpu.memory_space<vmem>>, %arg3: memref<1x128xf32, #tpu.memory_space<vmem>>, %arg4: memref<128x128xf32, #tpu.memory_space<vmem>>) attributes {dimension_semantics = [#tpu.dimension_semantics<parallel>], iteration_bounds = array<i64: 1>, scalar_prefetch = 0 : i64, scratch_operands = 0 : i64, tpu.core_type = #tpu.core_type<tc>, window_params = [{transform_indices = @transform_0, window_bounds = array<i64: 128, 108>}, {pipeline_mode = #tpu.pipeline_mode<synchronous>, transform_indices = @transform_1, window_bounds = array<i64: 108, 128>}, {pipeline_mode = #tpu.pipeline_mode<synchronous>, transform_indices = @transform_2, window_bounds = array<i64: 1, 128>}, {transform_indices = @transform_3, window_bounds = array<i64: 128, 128>}]} {
    %c0 = arith.constant 0 : index
    %c0_0 = arith.constant 0 : index
    %0 = vector.load %arg1[%c0, %c0_0] : memref<128x108xbf16, #tpu.memory_space<vmem>>, vector<128x108xbf16>
    %c0_1 = arith.constant 0 : index
    %c0_2 = arith.constant 0 : index
    %1 = vector.load %arg2[%c0_1, %c0_2] : memref<108x128xbf16, #tpu.memory_space<vmem>>, vector<108x128xbf16>
    %cst = arith.constant dense<0.000000e+00> : vector<128x128xf32>
    %2 = tpu.matmul %0, %1, %cst {dimension_numbers = #tpu.dot_dimension_numbers<[1], [0], [0], [1], [0, 0, 1, 1], [], []>} : vector<128x108xbf16>, vector<108x128xbf16>, vector<128x128xf32> -> vector<128x128xf32>
    %c0_3 = arith.constant 0 : index
    %c0_4 = arith.constant 0 : index
    %3 = vector.load %arg3[%c0_3, %c0_4] : memref<1x128xf32, #tpu.memory_space<vmem>>, vector<1x128xf32>
    %4 = vector.broadcast %3 : vector<1x128xf32> to vector<128x128xf32>
    %5 = arith.addf %2, %4 : vector<128x128xf32>
    %6 = math.tanh %5 : vector<128x128xf32>
    %c0_5 = arith.constant 0 : index
    %c0_6 = arith.constant 0 : index
    %7 = vector.load %arg4[%c0_5, %c0_6] : memref<128x128xf32, #tpu.memory_space<vmem>>, vector<128x128xf32>
    tpu.vector_store %arg4[%c0_5, %c0_6], %6 {strides = array<i32>} : memref<128x128xf32, #tpu.memory_space<vmem>>, vector<128x128xf32>,
    return
  }
  func.func @transform_0(%arg0: i32) -> (i32, i32) {
    %c0_i32 = arith.constant 0 : i32
    %c0_i32_0 = arith.constant 0 : i32
    return %arg0, %c0_i32 : i32, i32
  }
  func.func @transform_1(%arg0: i32) -> (i32, i32) {
    %c0_i32 = arith.constant 0 : i32
    %c0_i32_0 = arith.constant 0 : i32
    %c0_i32_1 = arith.constant 0 : i32
    return %c0_i32, %c0_i32_0 : i32, i32
  }
  func.func @transform_2(%arg0: i32) -> (i32, i32) {
    %c0_i32 = arith.constant 0 : i32
    %c0_i32_0 = arith.constant 0 : i32
    %c0_i32_1 = arith.constant 0 : i32
    return %c0_i32, %c0_i32_0 : i32, i32
  }
  func.func @transform_3(%arg0: i32) -> (i32, i32) {
    %c0_i32 = arith.constant 0 : i32
    %c0_i32_0 = arith.constant 0 : i32
    return %arg0, %c0_i32 : i32, i32
  }
}

</mosaic_0001>

<llo_original>
// kernel: vae_forward.6
$region0: #{vae_forward.6}
  #allocation0 [shape = 'u32[]', space=smem, size = 0x4, offset = 0x4, fixed_abs, tag = 'smem constant byte address 0x4 - core index']
  #allocation1 [shape = 'u32[72,128]{1,0:T(1,128)}', space=vmem, size = 0x9000, scoped, tag = 'internal scratch']
  %s0 = inlined_call_operand.vmem [shape: bf16[128,48], index: 0, kind: input, shape index: {}]
  %s1 = inlined_call_operand.vmem [shape: bf16[48,128], index: 1, kind: input, shape index: {}]
  %s2 = inlined_call_operand.vmem [shape: f32[1,128], index: 2, kind: input, shape index: {}]
  %s3 = inlined_call_operand.vmem [shape: f32[128,128], index: 3, kind: output, shape index: {}]
  %s4 = sld [smem:[#allocation0]]
  $region22: #{vae_forward.6} parent=0
    _
  %s6 = ssub.s32 1, %s4
  %s7 = scalar_select 0, %s6, %s4
  // Predicated region
  $region2: #{vae_forward.6} parent=0 // pred_check
    _
  $region3: #{vae_forward.6} parent=0 // pred_check_branch
    %9 = sbr.rel (0) target = $region5
  $region4: #{vae_forward.6} parent=0 // pred_region
    _
  $region5: #{vae_forward.6} parent=0 // pred_fallthru
    _
  // Predicated region
  $region6: #{vae_forward.6} parent=0 // pred_check
    _
  $region7: #{vae_forward.6} parent=0 // pred_check_branch
    %11 = sbr.rel (0) target = $region9
  $region8: #{vae_forward.6} parent=0 // pred_region
    _
  $region9: #{vae_forward.6} parent=0 // pred_fallthru
    _
  // Predicated region
  $region10: #{vae_forward.6} parent=0 // pred_check
    _
  $region11: #{vae_forward.6} parent=0 // pred_check_branch
    %13 = sbr.rel (0) target = $region13
  $region12: #{vae_forward.6} parent=0 // pred_region
    _
  $region13: #{vae_forward.6} parent=0 // pred_fallthru
    _
  %v15 = vld [vmem:[%s0] sm:$0xf]
  %v16 = vld [vmem:[%s0 + $0x4] sm:$0xf]
  %v17 = vld [vmem:[%s0 + $0x8] sm:$0xf]
  %v18 = vld [vmem:[%s0 + $0xc] sm:$0xf]
  %v19 = vld [vmem:[%s0 + $0x10] sm:$0xf]
  %v20 = vld [vmem:[%s0 + $0x14] sm:$0xf]
  %v21 = vld [vmem:[%s0 + $0x18] sm:$0xf]
  %v22 = vld [vmem:[%s0 + $0x1c] sm:$0xf]
  %v23 = vld [vmem:[%s0 + $0x20] sm:$0xf]
  %v24 = vld [vmem:[%s0 + $0x24] sm:$0xf]
  %v25 = vld [vmem:[%s0 + $0x28] sm:$0xf]
  %v26 = vld [vmem:[%s0 + $0x2c] sm:$0xf]
  %v27 = vld [vmem:[%s0 + $0x30] sm:$0xf]
  %v28 = vld [vmem:[%s0 + $0x34] sm:$0xf]
  %v29 = vld [vmem:[%s0 + $0x38] sm:$0xf]
  %v30 = vld [vmem:[%s0 + $0x3c] sm:$0xf]
  %v31 = vld [vmem:[%s1] sm:$0xf]
  %v32 = vld [vmem:[%s1 + $0x4] sm:$0xf]
  %v33 = vld [vmem:[%s1 + $0x8] sm:$0xf]
  %v34 = vld [vmem:[%s1 + $0xc] sm:$0xf]
  %v35 = vld [vmem:[%s1 + $0x10] sm:$0xf]
  %v36 = vld [vmem:[%s1 + $0x14] sm:$0xf]
  %v37 = vld [vmem:[%s2] sm:$0x1]
  %v39 = vperm.slane %v37, 0
  %v57 = vunpack.c.l.b16 %v15
  %v58 = vunpack.c.l.b16 %v16
  %v59 = vunpack.c.l.b16 %v17
  %v60 = vunpack.c.l.b16 %v18
  %v61 = vunpack.c.l.b16 %v19
  %v62 = vunpack.c.l.b16 %v20
  %v63 = vunpack.c.l.b16 %v21
  %v64 = vunpack.c.l.b16 %v22
  %v65 = vunpack.c.l.b16 %v23
  %v66 = vunpack.c.l.b16 %v24
  %v67 = vunpack.c.l.b16 %v25
  %v68 = vunpack.c.l.b16 %v26
  %v69 = vunpack.c.l.b16 %v27
  %v70 = vunpack.c.l.b16 %v28
  %v71 = vunpack.c.l.b16 %v29
  %v72 = vunpack.c.l.b16 %v30
  %v73 = vpack.c.b16 %v58, %v57
  %v74 = vpack.c.b16 %v60, %v59
  %v75 = vpack.c.b16 %v62, %v61
  %v76 = vpack.c.b16 %v64, %v63
  %v77 = vpack.c.b16 %v66, %v65
  %v78 = vpack.c.b16 %v68, %v67
  %v79 = vpack.c.b16 %v70, %v69
  %v80 = vpack.c.b16 %v72, %v71
  %v87 = vunpack.c.l.b16 %v31
  %v88 = vunpack.c.l.b16 %v32
  %v89 = vunpack.c.l.b16 %v33
  %v90 = vunpack.c.l.b16 %v34
  %v91 = vunpack.c.l.b16 %v35
  %v92 = vunpack.c.l.b16 %v36
  %v93 = vpack.c.b16 %v88, %v87
  %v94 = vpack.c.b16 %v90, %v89
  %v95 = vpack.c.b16 %v92, %v91
  %vm99 = vcmask 392192
  %v101 = vsel %vm99, %v73, 0
  %v104 = vsel %vm99, %v74, 0
  %v107 = vsel %vm99, %v75, 0
  %v110 = vsel %vm99, %v76, 0
  %v113 = vsel %vm99, %v77, 0
  %v116 = vsel %vm99, %v78, 0
  %v119 = vsel %vm99, %v79, 0
  %v122 = vsel %vm99, %v80, 0
  %124 = vmatpush.bf16.msra.mxu0 0
  %125 = vmatpush.bf16.msra.mxu0 0
  %126 = vmatpush.bf16.msra.mxu0 0
  %127 = vmatpush.bf16.msra.mxu0 0
  %128 = vmatpush.bf16.msra.mxu0 0
  %129 = vmatpush.bf16.msra.mxu0 %v95
  %130 = vmatpush.bf16.msra.mxu0 %v94
  %131 = vmatpush.bf16.msra.mxu0 %v93
  %132 = vmatmul.bf16.gmra.mxu0 %v101
  %v133 = vpop.f32.mrf.mxu0
  %v134 = vadd.f32 %v39, %v133
  %v135 = vpop.f32.mrf.mxu0
  %v136 = vadd.f32 %v39, %v135
  %137 = vmatmul.bf16.gmra.mxu0 %v104
  %v138 = vpop.f32.mrf.mxu0
  %v139 = vadd.f32 %v39, %v138
  %v140 = vpop.f32.mrf.mxu0
  %v141 = vadd.f32 %v39, %v140
  %142 = vmatmul.bf16.gmra.mxu0 %v107
  %v143 = vpop.f32.mrf.mxu0
  %v144 = vadd.f32 %v39, %v143
  %v145 = vpop.f32.mrf.mxu0
  %v146 = vadd.f32 %v39, %v145
  %147 = vmatmul.bf16.gmra.mxu0 %v110
  %v148 = vpop.f32.mrf.mxu0
  %v149 = vadd.f32 %v39, %v148
  %v150 = vpop.f32.mrf.mxu0
  %v151 = vadd.f32 %v39, %v150
  %152 = vmatmul.bf16.gmra.mxu0 %v113
  %v153 = vpop.f32.mrf.mxu0
  %v154 = vadd.f32 %v39, %v153
  %v155 = vpop.f32.mrf.mxu0
  %v156 = vadd.f32 %v39, %v155
  %157 = vmatmul.bf16.gmra.mxu0 %v116
  %v158 = vpop.f32.mrf.mxu0
  %v159 = vadd.f32 %v39, %v158
  %v160 = vpop.f32.mrf.mxu0
  %v161 = vadd.f32 %v39, %v160
  %162 = vmatmul.bf16.gmra.mxu0 %v119
  %v163 = vpop.f32.mrf.mxu0
  %v164 = vadd.f32 %v39, %v163
  %v165 = vpop.f32.mrf.mxu0
  %v166 = vadd.f32 %v39, %v165
  %167 = vmatmul.bf16.gmra.mxu0 %v122
  %v168 = vpop.f32.mrf.mxu0
  %v169 = vadd.f32 %v39, %v168
  %v170 = vpop.f32.mrf.mxu0
  %v171 = vadd.f32 %v39, %v170
  %172 = vdwg.mxu0
  %v173 = vmax.f32 %v134, 0.0
  %v174 = vmax.f32 %v136, 0.0
  %v175 = vmax.f32 %v139, 0.0
  %v176 = vmax.f32 %v141, 0.0
  %v177 = vmax.f32 %v144, 0.0
  %v178 = vmax.f32 %v146, 0.0
  %v179 = vmax.f32 %v149, 0.0
  %v180 = vmax.f32 %v151, 0.0
  %v181 = vmax.f32 %v154, 0.0
  %v182 = vmax.f32 %v156, 0.0
  %v183 = vmax.f32 %v159, 0.0
  %v184 = vmax.f32 %v161, 0.0
  %v185 = vmax.f32 %v164, 0.0
  %v186 = vmax.f32 %v166, 0.0
  %v187 = vmax.f32 %v169, 0.0
  %v188 = vmax.f32 %v171, 0.0
  %189 = vst [vmem:[%s3] sm:$0xff] %v173
  %190 = vst [vmem:[%s3 + $0x8] sm:$0xff] %v174
  %191 = vst [vmem:[%s3 + $0x10] sm:$0xff] %v175
  %192 = vst [vmem:[%s3 + $0x18] sm:$0xff] %v176
  %193 = vst [vmem:[%s3 + $0x20] sm:$0xff] %v177
  %194 = vst [vmem:[%s3 + $0x28] sm:$0xff] %v178
  %195 = vst [vmem:[%s3 + $0x30] sm:$0xff] %v179
  %196 = vst [vmem:[%s3 + $0x38] sm:$0xff] %v180
  %197 = vst [vmem:[%s3 + $0x40] sm:$0xff] %v181
  %198 = vst [vmem:[%s3 + $0x48] sm:$0xff] %v182
  %199 = vst [vmem:[%s3 + $0x50] sm:$0xff] %v183
  %200 = vst [vmem:[%s3 + $0x58] sm:$0xff] %v184
  %201 = vst [vmem:[%s3 + $0x60] sm:$0xff] %v185
  %202 = vst [vmem:[%s3 + $0x68] sm:$0xff] %v186
  %203 = vst [vmem:[%s3 + $0x70] sm:$0xff] %v187
  %204 = vst [vmem:[%s3 + $0x78] sm:$0xff] %v188
  // Predicated region
  $region14: #{vae_forward.6} parent=0 // pred_check
    _
  $region15: #{vae_forward.6} parent=0 // pred_check_branch
    %206 = sbr.rel (0) target = $region17
  $region16: #{vae_forward.6} parent=0 // pred_region
    _
  $region17: #{vae_forward.6} parent=0 // pred_fallthru
    _
  // Predicated region
  $region18: #{vae_forward.6} parent=0 // pred_check
    _
  $region19: #{vae_forward.6} parent=0 // pred_check_branch
    %208 = sbr.rel (0) target = $region21
  $region20: #{vae_forward.6} parent=0 // pred_region
    _
  $region21: #{vae_forward.6} parent=0 // pred_fallthru
    _

// kernel: vae_forward.7
$region0: #{vae_forward.7}
  #allocation0 [shape = 'u32[]', space=smem, size = 0x4, offset = 0x4, fixed_abs, tag = 'smem constant byte address 0x4 - core index']
  #allocation1 [shape = 'u32[72,128]{1,0:T(1,128)}', space=vmem, size = 0x9000, scoped, tag = 'internal scratch']
  %s0 = inlined_call_operand.vmem [shape: bf16[32,192], index: 0, kind: input, shape index: {}]
  %s1 = inlined_call_operand.vmem [shape: bf16[192,128], index: 1, kind: input, shape index: {}]
  %s2 = inlined_call_operand.vmem [shape: f32[1,128], index: 2, kind: input, shape index: {}]
  %s3 = inlined_call_operand.vmem [shape: f32[32,128], index: 3, kind: output, shape index: {}]
  %s4 = sld [smem:[#allocation0]]
  $region22: #{vae_forward.7} parent=0
    _
  %s6 = ssub.s32 1, %s4
  %s7 = scalar_select 0, %s6, %s4
  // Predicated region
  $region2: #{vae_forward.7} parent=0 // pred_check
    _
  $region3: #{vae_forward.7} parent=0 // pred_check_branch
    %9 = sbr.rel (0) target = $region5
  $region4: #{vae_forward.7} parent=0 // pred_region
    _
  $region5: #{vae_forward.7} parent=0 // pred_fallthru
    _
  // Predicated region
  $region6: #{vae_forward.7} parent=0 // pred_check
    _
  $region7: #{vae_forward.7} parent=0 // pred_check_branch
    %11 = sbr.rel (0) target = $region9
  $region8: #{vae_forward.7} parent=0 // pred_region
    _
  $region9: #{vae_forward.7} parent=0 // pred_fallthru
    _
  // Predicated region
  $region10: #{vae_forward.7} parent=0 // pred_check
    _
  $region11: #{vae_forward.7} parent=0 // pred_check_branch
    %13 = sbr.rel (0) target = $region13
  $region12: #{vae_forward.7} parent=0 // pred_region
    _
  $region13: #{vae_forward.7} parent=0 // pred_fallthru
    _
  %v15 = vld [vmem:[%s0] sm:$0xff]
  %v16 = vld [vmem:[%s0 + $0x8] sm:$0xff]
  %v17 = vld [vmem:[%s0 + $0x10] sm:$0xff]
  %v18 = vld [vmem:[%s0 + $0x18] sm:$0xff]
  %v19 = vld [vmem:[%s1] sm:$0xf]
  %v20 = vld [vmem:[%s1 + $0x4] sm:$0xf]
  %v21 = vld [vmem:[%s1 + $0x8] sm:$0xf]
  %v22 = vld [vmem:[%s1 + $0xc] sm:$0xf]
  %v23 = vld [vmem:[%s1 + $0x10] sm:$0xf]
  %v24 = vld [vmem:[%s1 + $0x14] sm:$0xf]
  %v25 = vld [vmem:[%s1 + $0x18] sm:$0xf]
  %v26 = vld [vmem:[%s1 + $0x1c] sm:$0xf]
  %v27 = vld [vmem:[%s1 + $0x20] sm:$0xf]
  %v28 = vld [vmem:[%s1 + $0x24] sm:$0xf]
  %v29 = vld [vmem:[%s1 + $0x28] sm:$0xf]
  %v30 = vld [vmem:[%s1 + $0x2c] sm:$0xf]
  %v31 = vld [vmem:[%s1 + $0x30] sm:$0xf]
  %v32 = vld [vmem:[%s1 + $0x34] sm:$0xf]
  %v33 = vld [vmem:[%s1 + $0x38] sm:$0xf]
  %v34 = vld [vmem:[%s1 + $0x3c] sm:$0xf]
  %v35 = vld [vmem:[%s1 + $0x40] sm:$0xf]
  %v36 = vld [vmem:[%s1 + $0x44] sm:$0xf]
  %v37 = vld [vmem:[%s1 + $0x48] sm:$0xf]
  %v38 = vld [vmem:[%s1 + $0x4c] sm:$0xf]
  %v39 = vld [vmem:[%s1 + $0x50] sm:$0xf]
  %v40 = vld [vmem:[%s1 + $0x54] sm:$0xf]
  %v41 = vld [vmem:[%s1 + $0x58] sm:$0xf]
  %v42 = vld [vmem:[%s1 + $0x5c] sm:$0xf]
  %v43 = vld [vmem:[%s2] sm:$0x1]
  %v45 = vperm.slane %v43, 0
  %v51 = vunpack.c.l.b16 %v15
  %v52 = vunpack.c.h.b16 %v15
  %v53 = vunpack.c.l.b16 %v16
  %v54 = vunpack.c.h.b16 %v16
  %v55 = vunpack.c.l.b16 %v17
  %v56 = vunpack.c.h.b16 %v17
  %v57 = vunpack.c.l.b16 %v18
  %v58 = vunpack.c.h.b16 %v18
  %v59 = vpack.c.b16 %v53, %v51
  %v60 = vpack.c.b16 %v54, %v52
  %v61 = vpack.c.b16 %v57, %v55
  %v62 = vpack.c.b16 %v58, %v56
  %v89 = vunpack.c.l.b16 %v19
  %v90 = vunpack.c.l.b16 %v20
  %v91 = vunpack.c.l.b16 %v21
  %v92 = vunpack.c.l.b16 %v22
  %v93 = vunpack.c.l.b16 %v23
  %v94 = vunpack.c.l.b16 %v24
  %v95 = vunpack.c.l.b16 %v25
  %v96 = vunpack.c.l.b16 %v26
  %v97 = vunpack.c.l.b16 %v27
  %v98 = vunpack.c.l.b16 %v28
  %v99 = vunpack.c.l.b16 %v29
  %v100 = vunpack.c.l.b16 %v30
  %v101 = vunpack.c.l.b16 %v31
  %v102 = vunpack.c.l.b16 %v32
  %v103 = vunpack.c.l.b16 %v33
  %v104 = vunpack.c.l.b16 %v34
  %v105 = vunpack.c.l.b16 %v35
  %v106 = vunpack.c.l.b16 %v36
  %v107 = vunpack.c.l.b16 %v37
  %v108 = vunpack.c.l.b16 %v38
  %v109 = vunpack.c.l.b16 %v39
  %v110 = vunpack.c.l.b16 %v40
  %v111 = vunpack.c.l.b16 %v41
  %v112 = vunpack.c.l.b16 %v42
  %v113 = vpack.c.b16 %v90, %v89
  %v114 = vpack.c.b16 %v92, %v91
  %v115 = vpack.c.b16 %v94, %v93
  %v116 = vpack.c.b16 %v96, %v95
  %v117 = vpack.c.b16 %v98, %v97
  %v118 = vpack.c.b16 %v100, %v99
  %v119 = vpack.c.b16 %v102, %v101
  %v120 = vpack.c.b16 %v104, %v103
  %v121 = vpack.c.b16 %v106, %v105
  %v122 = vpack.c.b16 %v108, %v107
  %v123 = vpack.c.b16 %v110, %v109
  %v124 = vpack.c.b16 %v112, %v111
  %vm137 = vcmask 523264
  %v139 = vsel %vm137, %v60, 0
  %v142 = vsel %vm137, %v62, 0
  %144 = vmatpush.bf16.msra.mxu0 %v120
  %145 = vmatpush.bf16.msra.mxu0 %v119
  %146 = vmatpush.bf16.msra.mxu0 %v118
  %147 = vmatpush.bf16.msra.mxu0 %v117
  %148 = vmatpush.bf16.msra.mxu0 %v116
  %149 = vmatpush.bf16.msra.mxu0 %v115
  %150 = vmatpush.bf16.msra.mxu0 %v114
  %151 = vmatpush.bf16.msra.mxu0 %v113
  %152 = vmatmul.bf16.gmra.mxu0 %v59
  %v153 = vpop.f32.mrf.mxu0
  %v154 = vadd.f32 %v45, %v153
  %v155 = vpop.f32.mrf.mxu0
  %v156 = vadd.f32 %v45, %v155
  %157 = vmatmul.bf16.gmra.mxu0 %v61
  %v158 = vpop.f32.mrf.mxu0
  %v159 = vadd.f32 %v45, %v158
  %v160 = vpop.f32.mrf.mxu0
  %v161 = vadd.f32 %v45, %v160
  %162 = vdwg.mxu0
  %163 = vmatpush.bf16.msra.mxu0 0
  %164 = vmatpush.bf16.msra.mxu0 0
  %165 = vmatpush.bf16.msra.mxu0 0
  %166 = vmatpush.bf16.msra.mxu0 0
  %167 = vmatpush.bf16.msra.mxu0 %v124
  %168 = vmatpush.bf16.msra.mxu0 %v123
  %169 = vmatpush.bf16.msra.mxu0 %v122
  %170 = vmatpush.bf16.msra.mxu0 %v121
  %171 = vmatmul.bf16.gmra.mxu0 %v139
  %v172 = vpop.f32.mrf.mxu0
  %v173 = vadd.f32 %v154, %v172
  %v174 = vpop.f32.mrf.mxu0
  %v175 = vadd.f32 %v156, %v174
  %176 = vmatmul.bf16.gmra.mxu0 %v142
  %v177 = vpop.f32.mrf.mxu0
  %v178 = vadd.f32 %v159, %v177
  %v179 = vpop.f32.mrf.mxu0
  %v180 = vadd.f32 %v161, %v179
  %181 = vdwg.mxu0
  %v182 = vmax.f32 %v173, 0.0
  %v183 = vmax.f32 %v175, 0.0
  %v184 = vmax.f32 %v178, 0.0
  %v185 = vmax.f32 %v180, 0.0
  %186 = vst [vmem:[%s3] sm:$0xff] %v182
  %187 = vst [vmem:[%s3 + $0x8] sm:$0xff] %v183
  %188 = vst [vmem:[%s3 + $0x10] sm:$0xff] %v184
  %189 = vst [vmem:[%s3 + $0x18] sm:$0xff] %v185
  // Predicated region
  $region14: #{vae_forward.7} parent=0 // pred_check
    _
  $region15: #{vae_forward.7} parent=0 // pred_check_branch
    %191 = sbr.rel (0) target = $region17
  $region16: #{vae_forward.7} parent=0 // pred_region
    _
  $region17: #{vae_forward.7} parent=0 // pred_fallthru
    _
  // Predicated region
  $region18: #{vae_forward.7} parent=0 // pred_check
    _
  $region19: #{vae_forward.7} parent=0 // pred_check_branch
    %193 = sbr.rel (0) target = $region21
  $region20: #{vae_forward.7} parent=0 // pred_region
    _
  $region21: #{vae_forward.7} parent=0 // pred_fallthru
    _

// kernel: vae_forward.8
$region0: #{vae_forward.8}
  #allocation0 [shape = 'u32[]', space=smem, size = 0x4, offset = 0x4, fixed_abs, tag = 'smem constant byte address 0x4 - core index']
  #allocation1 [shape = 'u32[72,128]{1,0:T(1,128)}', space=vmem, size = 0x9000, scoped, tag = 'internal scratch']
  %s0 = inlined_call_operand.vmem [shape: bf16[8,384], index: 0, kind: input, shape index: {}]
  %s1 = inlined_call_operand.vmem [shape: bf16[384,256], index: 1, kind: input, shape index: {}]
  %s2 = inlined_call_operand.vmem [shape: f32[1,256], index: 2, kind: input, shape index: {}]
  %s3 = inlined_call_operand.vmem [shape: f32[8,128], index: 3, kind: input, shape index: {}]
  %s4 = inlined_call_operand.vmem [shape: f32[8,256], index: 4, kind: output, shape index: {0}]
  %s5 = inlined_call_operand.vmem [shape: f32[8,128], index: 5, kind: output, shape index: {1}]
  %6 = xla_tuple %s4, %s5
  %s7 = sld [smem:[#allocation0]]
  $region34: #{vae_forward.8} parent=0
    _
  %s9 = ssub.s32 1, %s7
  %s10 = scalar_select 0, %s9, %s7
  // Predicated region
  $region2: #{vae_forward.8} parent=0 // pred_check
    _
  $region3: #{vae_forward.8} parent=0 // pred_check_branch
    %12 = sbr.rel (0) target = $region5
  $region4: #{vae_forward.8} parent=0 // pred_region
    _
  $region5: #{vae_forward.8} parent=0 // pred_fallthru
    _
  // Predicated region
  $region6: #{vae_forward.8} parent=0 // pred_check
    _
  $region7: #{vae_forward.8} parent=0 // pred_check_branch
    %14 = sbr.rel (0) target = $region9
  $region8: #{vae_forward.8} parent=0 // pred_region
    _
  $region9: #{vae_forward.8} parent=0 // pred_fallthru
    _
  // Predicated region
  $region10: #{vae_forward.8} parent=0 // pred_check
    _
  $region11: #{vae_forward.8} parent=0 // pred_check_branch
    %16 = sbr.rel (0) target = $region13
  $region12: #{vae_forward.8} parent=0 // pred_region
    _
  $region13: #{vae_forward.8} parent=0 // pred_fallthru
    _
  // Predicated region
  $region14: #{vae_forward.8} parent=0 // pred_check
    _
  $region15: #{vae_forward.8} parent=0 // pred_check_branch
    %18 = sbr.rel (0) target = $region17
  $region16: #{vae_forward.8} parent=0 // pred_region
    _
  $region17: #{vae_forward.8} parent=0 // pred_fallthru
    _
  %v19 = vld [vmem:[%s0] sm:$0xff]
  %v20 = vld [vmem:[%s0 + $0x8] sm:$0xf]
  %v21 = vld [vmem:[%s1] sm:$0xff]
  %v22 = vld [vmem:[%s1 + $0x8] sm:$0xff]
  %v23 = vld [vmem:[%s1 + $0x10] sm:$0xff]
  %v24 = vld [vmem:[%s1 + $0x18] sm:$0xff]
  %v25 = vld [vmem:[%s1 + $0x20] sm:$0xff]
  %v26 = vld [vmem:[%s1 + $0x28] sm:$0xff]
  %v27 = vld [vmem:[%s1 + $0x30] sm:$0xff]
  %v28 = vld [vmem:[%s1 + $0x38] sm:$0xff]
  %v29 = vld [vmem:[%s1 + $0x40] sm:$0xff]
  %v30 = vld [vmem:[%s1 + $0x48] sm:$0xff]
  %v31 = vld [vmem:[%s1 + $0x50] sm:$0xff]
  %v32 = vld [vmem:[%s1 + $0x58] sm:$0xff]
  %v33 = vld [vmem:[%s1 + $0x60] sm:$0xff]
  %v34 = vld [vmem:[%s1 + $0x68] sm:$0xff]
  %v35 = vld [vmem:[%s1 + $0x70] sm:$0xff]
  %v36 = vld [vmem:[%s1 + $0x78] sm:$0xff]
  %v37 = vld [vmem:[%s1 + $0x80] sm:$0xff]
  %v38 = vld [vmem:[%s1 + $0x88] sm:$0xff]
  %v39 = vld [vmem:[%s1 + $0x90] sm:$0xff]
  %v40 = vld [vmem:[%s1 + $0x98] sm:$0xff]
  %v41 = vld [vmem:[%s1 + $0xa0] sm:$0xff]
  %v42 = vld [vmem:[%s1 + $0xa8] sm:$0xff]
  %v43 = vld [vmem:[%s1 + $0xb0] sm:$0xff]
  %v44 = vld [vmem:[%s1 + $0xb8] sm:$0xff]
  %v45 = vld [vmem:[%s1 + $0xc0] sm:$0xff]
  %v46 = vld [vmem:[%s1 + $0xc8] sm:$0xff]
  %v47 = vld [vmem:[%s1 + $0xd0] sm:$0xff]
  %v48 = vld [vmem:[%s1 + $0xd8] sm:$0xff]
  %v49 = vld [vmem:[%s1 + $0xe0] sm:$0xff]
  %v50 = vld [vmem:[%s1 + $0xe8] sm:$0xff]
  %v51 = vld [vmem:[%s1 + $0xf0] sm:$0xff]
  %v52 = vld [vmem:[%s1 + $0xf8] sm:$0xff]
  %v53 = vld [vmem:[%s1 + $0x100] sm:$0xff]
  %v54 = vld [vmem:[%s1 + $0x108] sm:$0xff]
  %v55 = vld [vmem:[%s1 + $0x110] sm:$0xff]
  %v56 = vld [vmem:[%s1 + $0x118] sm:$0xff]
  %v57 = vld [vmem:[%s1 + $0x120] sm:$0xff]
  %v58 = vld [vmem:[%s1 + $0x128] sm:$0xff]
  %v59 = vld [vmem:[%s1 + $0x130] sm:$0xff]
  %v60 = vld [vmem:[%s1 + $0x138] sm:$0xff]
  %v61 = vld [vmem:[%s1 + $0x140] sm:$0xff]
  %v62 = vld [vmem:[%s1 + $0x148] sm:$0xff]
  %v63 = vld [vmem:[%s1 + $0x150] sm:$0xff]
  %v64 = vld [vmem:[%s1 + $0x158] sm:$0xff]
  %v65 = vld [vmem:[%s1 + $0x160] sm:$0xff]
  %v66 = vld [vmem:[%s1 + $0x168] sm:$0xff]
  %v67 = vld [vmem:[%s1 + $0x170] sm:$0xff]
  %v68 = vld [vmem:[%s1 + $0x178] sm:$0xff]
  %v69 = vld [vmem:[%s2] sm:$0x3]
  %v71 = vperm.slane %v69, 0
  %v72 = vperm.slane %v69, 1
  %v77 = vunpack.c.l.b16 %v19
  %v78 = vunpack.c.h.b16 %v19
  %v79 = vunpack.c.l.b16 %v20
  %v80 = vpack.c.b16 %v77, %v77
  %v81 = vpack.c.b16 %v78, %v78
  %v82 = vpack.c.b16 %v79, %v79
  %v134 = vunpack.c.l.b16 %v21
  %v135 = vunpack.c.h.b16 %v21
  %v136 = vunpack.c.l.b16 %v22
  %v137 = vunpack.c.h.b16 %v22
  %v138 = vunpack.c.l.b16 %v23
  %v139 = vunpack.c.h.b16 %v23
  %v140 = vunpack.c.l.b16 %v24
  %v141 = vunpack.c.h.b16 %v24
  %v142 = vunpack.c.l.b16 %v25
  %v143 = vunpack.c.h.b16 %v25
  %v144 = vunpack.c.l.b16 %v26
  %v145 = vunpack.c.h.b16 %v26
  %v146 = vunpack.c.l.b16 %v27
  %v147 = vunpack.c.h.b16 %v27
  %v148 = vunpack.c.l.b16 %v28
  %v149 = vunpack.c.h.b16 %v28
  %v150 = vunpack.c.l.b16 %v29
  %v151 = vunpack.c.h.b16 %v29
  %v152 = vunpack.c.l.b16 %v30
  %v153 = vunpack.c.h.b16 %v30
  %v154 = vunpack.c.l.b16 %v31
  %v155 = vunpack.c.h.b16 %v31
  %v156 = vunpack.c.l.b16 %v32
  %v157 = vunpack.c.h.b16 %v32
  %v158 = vunpack.c.l.b16 %v33
  %v159 = vunpack.c.h.b16 %v33
  %v160 = vunpack.c.l.b16 %v34
  %v161 = vunpack.c.h.b16 %v34
  %v162 = vunpack.c.l.b16 %v35
  %v163 = vunpack.c.h.b16 %v35
  %v164 = vunpack.c.l.b16 %v36
  %v165 = vunpack.c.h.b16 %v36
  %v166 = vunpack.c.l.b16 %v37
  %v167 = vunpack.c.h.b16 %v37
  %v168 = vunpack.c.l.b16 %v38
  %v169 = vunpack.c.h.b16 %v38
  %v170 = vunpack.c.l.b16 %v39
  %v171 = vunpack.c.h.b16 %v39
  %v172 = vunpack.c.l.b16 %v40
  %v173 = vunpack.c.h.b16 %v40
  %v174 = vunpack.c.l.b16 %v41
  %v175 = vunpack.c.h.b16 %v41
  %v176 = vunpack.c.l.b16 %v42
  %v177 = vunpack.c.h.b16 %v42
  %v178 = vunpack.c.l.b16 %v43
  %v179 = vunpack.c.h.b16 %v43
  %v180 = vunpack.c.l.b16 %v44
  %v181 = vunpack.c.h.b16 %v44
  %v182 = vunpack.c.l.b16 %v45
  %v183 = vunpack.c.h.b16 %v45
  %v184 = vunpack.c.l.b16 %v46
  %v185 = vunpack.c.h.b16 %v46
  %v186 = vunpack.c.l.b16 %v47
  %v187 = vunpack.c.h.b16 %v47
  %v188 = vunpack.c.l.b16 %v48
  %v189 = vunpack.c.h.b16 %v48
  %v190 = vunpack.c.l.b16 %v49
  %v191 = vunpack.c.h.b16 %v49
  %v192 = vunpack.c.l.b16 %v50
  %v193 = vunpack.c.h.b16 %v50
  %v194 = vunpack.c.l.b16 %v51
  %v195 = vunpack.c.h.b16 %v51
  %v196 = vunpack.c.l.b16 %v52
  %v197 = vunpack.c.h.b16 %v52
  %v198 = vunpack.c.l.b16 %v53
  %v199 = vunpack.c.h.b16 %v53
  %v200 = vunpack.c.l.b16 %v54
  %v201 = vunpack.c.h.b16 %v54
  %v202 = vunpack.c.l.b16 %v55
  %v203 = vunpack.c.h.b16 %v55
  %v204 = vunpack.c.l.b16 %v56
  %v205 = vunpack.c.h.b16 %v56
  %v206 = vunpack.c.l.b16 %v57
  %v207 = vunpack.c.h.b16 %v57
  %v208 = vunpack.c.l.b16 %v58
  %v209 = vunpack.c.h.b16 %v58
  %v210 = vunpack.c.l.b16 %v59
  %v211 = vunpack.c.h.b16 %v59
  %v212 = vunpack.c.l.b16 %v60
  %v213 = vunpack.c.h.b16 %v60
  %v214 = vunpack.c.l.b16 %v61
  %v215 = vunpack.c.h.b16 %v61
  %v216 = vunpack.c.l.b16 %v62
  %v217 = vunpack.c.h.b16 %v62
  %v218 = vunpack.c.l.b16 %v63
  %v219 = vunpack.c.h.b16 %v63
  %v220 = vunpack.c.l.b16 %v64
  %v221 = vunpack.c.h.b16 %v64
  %v222 = vunpack.c.l.b16 %v65
  %v223 = vunpack.c.h.b16 %v65
  %v224 = vunpack.c.l.b16 %v66
  %v225 = vunpack.c.h.b16 %v66
  %v226 = vunpack.c.l.b16 %v67
  %v227 = vunpack.c.h.b16 %v67
  %v228 = vunpack.c.l.b16 %v68
  %v229 = vunpack.c.h.b16 %v68
  %v230 = vpack.c.b16 %v136, %v134
  %v231 = vpack.c.b16 %v137, %v135
  %v232 = vpack.c.b16 %v140, %v138
  %v233 = vpack.c.b16 %v141, %v139
  %v234 = vpack.c.b16 %v144, %v142
  %v235 = vpack.c.b16 %v145, %v143
  %v236 = vpack.c.b16 %v148, %v146
  %v237 = vpack.c.b16 %v149, %v147
  %v238 = vpack.c.b16 %v152, %v150
  %v239 = vpack.c.b16 %v153, %v151
  %v240 = vpack.c.b16 %v156, %v154
  %v241 = vpack.c.b16 %v157, %v155
  %v242 = vpack.c.b16 %v160, %v158
  %v243 = vpack.c.b16 %v161, %v159
  %v244 = vpack.c.b16 %v164, %v162
  %v245 = vpack.c.b16 %v165, %v163
  %v246 = vpack.c.b16 %v168, %v166
  %v247 = vpack.c.b16 %v169, %v167
  %v248 = vpack.c.b16 %v172, %v170
  %v249 = vpack.c.b16 %v173, %v171
  %v250 = vpack.c.b16 %v176, %v174
  %v251 = vpack.c.b16 %v177, %v175
  %v252 = vpack.c.b16 %v180, %v178
  %v253 = vpack.c.b16 %v181, %v179
  %v254 = vpack.c.b16 %v184, %v182
  %v255 = vpack.c.b16 %v185, %v183
  %v256 = vpack.c.b16 %v188, %v186
  %v257 = vpack.c.b16 %v189, %v187
  %v258 = vpack.c.b16 %v192, %v190
  %v259 = vpack.c.b16 %v193, %v191
  %v260 = vpack.c.b16 %v196, %v194
  %v261 = vpack.c.b16 %v197, %v195
  %v262 = vpack.c.b16 %v200, %v198
  %v263 = vpack.c.b16 %v201, %v199
  %v264 = vpack.c.b16 %v204, %v202
  %v265 = vpack.c.b16 %v205, %v203
  %v266 = vpack.c.b16 %v208, %v206
  %v267 = vpack.c.b16 %v209, %v207
  %v268 = vpack.c.b16 %v212, %v210
  %v269 = vpack.c.b16 %v213, %v211
  %v270 = vpack.c.b16 %v216, %v214
  %v271 = vpack.c.b16 %v217, %v215
  %v272 = vpack.c.b16 %v220, %v218
  %v273 = vpack.c.b16 %v221, %v219
  %v274 = vpack.c.b16 %v224, %v222
  %v275 = vpack.c.b16 %v225, %v223
  %v276 = vpack.c.b16 %v228, %v226
  %v277 = vpack.c.b16 %v229, %v227
  %326 = vmatpush.bf16.msra.mxu0 %v244
  %327 = vmatpush.bf16.msra.mxu0 %v242
  %328 = vmatpush.bf16.msra.mxu0 %v240
  %329 = vmatpush.bf16.msra.mxu0 %v238
  %330 = vmatpush.bf16.msra.mxu0 %v236
  %331 = vmatpush.bf16.msra.mxu0 %v234
  %332 = vmatpush.bf16.msra.mxu0 %v232
  %333 = vmatpush.bf16.msra.mxu0 %v230
  %334 = vmatmul.bf16.gmra.mxu0 %v80
  %v335 = vpop.f32.mrf.mxu0
  %v336 = vadd.f32 %v71, %v335
  %v337 = vpop.f32.mrf.mxu0
  %338 = vdwg.mxu0
  %339 = vmatpush.bf16.msra.mxu0 %v260
  %340 = vmatpush.bf16.msra.mxu0 %v258
  %341 = vmatpush.bf16.msra.mxu0 %v256
  %342 = vmatpush.bf16.msra.mxu0 %v254
  %343 = vmatpush.bf16.msra.mxu0 %v252
  %344 = vmatpush.bf16.msra.mxu0 %v250
  %345 = vmatpush.bf16.msra.mxu0 %v248
  %346 = vmatpush.bf16.msra.mxu0 %v246
  %347 = vmatmul.bf16.gmra.mxu0 %v81
  %v348 = vpop.f32.mrf.mxu0
  %v349 = vadd.f32 %v336, %v348
  %v350 = vpop.f32.mrf.mxu0
  %351 = vdwg.mxu0
  %352 = vmatpush.bf16.msra.mxu0 %v276
  %353 = vmatpush.bf16.msra.mxu0 %v274
  %354 = vmatpush.bf16.msra.mxu0 %v272
  %355 = vmatpush.bf16.msra.mxu0 %v270
  %356 = vmatpush.bf16.msra.mxu0 %v268
  %357 = vmatpush.bf16.msra.mxu0 %v266
  %358 = vmatpush.bf16.msra.mxu0 %v264
  %359 = vmatpush.bf16.msra.mxu0 %v262
  %360 = vmatmul.bf16.gmra.mxu0 %v82
  %v361 = vpop.f32.mrf.mxu0
  %v362 = vadd.f32 %v349, %v361
  %v363 = vpop.f32.mrf.mxu0
  %364 = vdwg.mxu0
  %365 = vmatpush.bf16.msra.mxu0 %v245
  %366 = vmatpush.bf16.msra.mxu0 %v243
  %367 = vmatpush.bf16.msra.mxu0 %v241
  %368 = vmatpush.bf16.msra.mxu0 %v239
  %369 = vmatpush.bf16.msra.mxu0 %v237
  %370 = vmatpush.bf16.msra.mxu0 %v235
  %371 = vmatpush.bf16.msra.mxu0 %v233
  %372 = vmatpush.bf16.msra.mxu0 %v231
  %373 = vmatmul.bf16.gmra.mxu0 %v80
  %v374 = vpop.f32.mrf.mxu0
  %v375 = vadd.f32 %v72, %v374
  %v376 = vpop.f32.mrf.mxu0
  %377 = vdwg.mxu0
  %378 = vmatpush.bf16.msra.mxu0 %v261
  %379 = vmatpush.bf16.msra.mxu0 %v259
  %380 = vmatpush.bf16.msra.mxu0 %v257
  %381 = vmatpush.bf16.msra.mxu0 %v255
  %382 = vmatpush.bf16.msra.mxu0 %v253
  %383 = vmatpush.bf16.msra.mxu0 %v251
  %384 = vmatpush.bf16.msra.mxu0 %v249
  %385 = vmatpush.bf16.msra.mxu0 %v247
  %386 = vmatmul.bf16.gmra.mxu0 %v81
  %v387 = vpop.f32.mrf.mxu0
  %v388 = vadd.f32 %v375, %v387
  %v389 = vpop.f32.mrf.mxu0
  %390 = vdwg.mxu0
  %391 = vmatpush.bf16.msra.mxu0 %v277
  %392 = vmatpush.bf16.msra.mxu0 %v275
  %393 = vmatpush.bf16.msra.mxu0 %v273
  %394 = vmatpush.bf16.msra.mxu0 %v271
  %395 = vmatpush.bf16.msra.mxu0 %v269
  %396 = vmatpush.bf16.msra.mxu0 %v267
  %397 = vmatpush.bf16.msra.mxu0 %v265
  %398 = vmatpush.bf16.msra.mxu0 %v263
  %399 = vmatmul.bf16.gmra.mxu0 %v82
  %v400 = vpop.f32.mrf.mxu0
  %v401 = vadd.f32 %v388, %v400
  %v402 = vpop.f32.mrf.mxu0
  %403 = vdwg.mxu0
  %v404 = vmax.f32 %v362, 0.0
  %v405 = vmax.f32 %v401, 0.0
  %406 = vst [vmem:[%s4] sm:$0xff] %v404
  %407 = vst [vmem:[%s4 + $0x8] sm:$0xff] %v405
  %v408 = vld [vmem:[%s3] sm:$0xff]
  %v409 = vmul.f32 %v405, 0.5
  %v410 = vmul.f32 %v409, 1.442695
  %v411 = vpow.pop %v410
  %v412 = vmul.f32 %v408, %v411
  %v413 = vadd.f32 %v412, %v404
  %414 = vst [vmem:[%s5] sm:$0xff] %v413
  // Predicated region
  $region18: #{vae_forward.8} parent=0 // pred_check
    _
  $region19: #{vae_forward.8} parent=0 // pred_check_branch
    %416 = sbr.rel (0) target = $region21
  $region20: #{vae_forward.8} parent=0 // pred_region
    _
  $region21: #{vae_forward.8} parent=0 // pred_fallthru
    _
  // Predicated region
  $region22: #{vae_forward.8} parent=0 // pred_check
    _
  $region23: #{vae_forward.8} parent=0 // pred_check_branch
    %418 = sbr.rel (0) target = $region25
  $region24: #{vae_forward.8} parent=0 // pred_region
    _
  $region25: #{vae_forward.8} parent=0 // pred_fallthru
    _
  // Predicated region
  $region26: #{vae_forward.8} parent=0 // pred_check
    _
  $region27: #{vae_forward.8} parent=0 // pred_check_branch
    %420 = sbr.rel (0) target = $region29
  $region28: #{vae_forward.8} parent=0 // pred_region
    _
  $region29: #{vae_forward.8} parent=0 // pred_fallthru
    _
  // Predicated region
  $region30: #{vae_forward.8} parent=0 // pred_check
    _
  $region31: #{vae_forward.8} parent=0 // pred_check_branch
    %422 = sbr.rel (0) target = $region33
  $region32: #{vae_forward.8} parent=0 // pred_region
    _
  $region33: #{vae_forward.8} parent=0 // pred_fallthru
    _

// kernel: vae_forward.9
$region0: #{vae_forward.9}
  #allocation0 [shape = 'u32[]', space=smem, size = 0x4, offset = 0x4, fixed_abs, tag = 'smem constant byte address 0x4 - core index']
  #allocation1 [shape = 'u32[72,128]{1,0:T(1,128)}', space=vmem, size = 0x9000, scoped, tag = 'internal scratch']
  %s0 = inlined_call_operand.vmem [shape: bf16[8,432], index: 0, kind: input, shape index: {}]
  %s1 = inlined_call_operand.vmem [shape: bf16[432,128], index: 1, kind: input, shape index: {}]
  %s2 = inlined_call_operand.vmem [shape: f32[1,128], index: 2, kind: input, shape index: {}]
  %s3 = inlined_call_operand.vmem [shape: f32[8,128], index: 3, kind: output, shape index: {}]
  %s4 = sld [smem:[#allocation0]]
  $region22: #{vae_forward.9} parent=0
    _
  %s6 = ssub.s32 1, %s4
  %s7 = scalar_select 0, %s6, %s4
  // Predicated region
  $region2: #{vae_forward.9} parent=0 // pred_check
    _
  $region3: #{vae_forward.9} parent=0 // pred_check_branch
    %9 = sbr.rel (0) target = $region5
  $region4: #{vae_forward.9} parent=0 // pred_region
    _
  $region5: #{vae_forward.9} parent=0 // pred_fallthru
    _
  // Predicated region
  $region6: #{vae_forward.9} parent=0 // pred_check
    _
  $region7: #{vae_forward.9} parent=0 // pred_check_branch
    %11 = sbr.rel (0) target = $region9
  $region8: #{vae_forward.9} parent=0 // pred_region
    _
  $region9: #{vae_forward.9} parent=0 // pred_fallthru
    _
  // Predicated region
  $region10: #{vae_forward.9} parent=0 // pred_check
    _
  $region11: #{vae_forward.9} parent=0 // pred_check_branch
    %13 = sbr.rel (0) target = $region13
  $region12: #{vae_forward.9} parent=0 // pred_region
    _
  $region13: #{vae_forward.9} parent=0 // pred_fallthru
    _
  %v15 = vld [vmem:[%s0] sm:$0xff]
  %v16 = vld [vmem:[%s0 + $0x8] sm:$0xff]
  %v17 = vld [vmem:[%s1] sm:$0xf]
  %v18 = vld [vmem:[%s1 + $0x4] sm:$0xf]
  %v19 = vld [vmem:[%s1 + $0x8] sm:$0xf]
  %v20 = vld [vmem:[%s1 + $0xc] sm:$0xf]
  %v21 = vld [vmem:[%s1 + $0x10] sm:$0xf]
  %v22 = vld [vmem:[%s1 + $0x14] sm:$0xf]
  %v23 = vld [vmem:[%s1 + $0x18] sm:$0xf]
  %v24 = vld [vmem:[%s1 + $0x1c] sm:$0xf]
  %v25 = vld [vmem:[%s1 + $0x20] sm:$0xf]
  %v26 = vld [vmem:[%s1 + $0x24] sm:$0xf]
  %v27 = vld [vmem:[%s1 + $0x28] sm:$0xf]
  %v28 = vld [vmem:[%s1 + $0x2c] sm:$0xf]
  %v29 = vld [vmem:[%s1 + $0x30] sm:$0xf]
  %v30 = vld [vmem:[%s1 + $0x34] sm:$0xf]
  %v31 = vld [vmem:[%s1 + $0x38] sm:$0xf]
  %v32 = vld [vmem:[%s1 + $0x3c] sm:$0xf]
  %v33 = vld [vmem:[%s1 + $0x40] sm:$0xf]
  %v34 = vld [vmem:[%s1 + $0x44] sm:$0xf]
  %v35 = vld [vmem:[%s1 + $0x48] sm:$0xf]
  %v36 = vld [vmem:[%s1 + $0x4c] sm:$0xf]
  %v37 = vld [vmem:[%s1 + $0x50] sm:$0xf]
  %v38 = vld [vmem:[%s1 + $0x54] sm:$0xf]
  %v39 = vld [vmem:[%s1 + $0x58] sm:$0xf]
  %v40 = vld [vmem:[%s1 + $0x5c] sm:$0xf]
  %v41 = vld [vmem:[%s1 + $0x60] sm:$0xf]
  %v42 = vld [vmem:[%s1 + $0x64] sm:$0xf]
  %v43 = vld [vmem:[%s1 + $0x68] sm:$0xf]
  %v44 = vld [vmem:[%s1 + $0x6c] sm:$0xf]
  %v45 = vld [vmem:[%s1 + $0x70] sm:$0xf]
  %v46 = vld [vmem:[%s1 + $0x74] sm:$0xf]
  %v47 = vld [vmem:[%s1 + $0x78] sm:$0xf]
  %v48 = vld [vmem:[%s1 + $0x7c] sm:$0xf]
  %v49 = vld [vmem:[%s1 + $0x80] sm:$0xf]
  %v50 = vld [vmem:[%s1 + $0x84] sm:$0xf]
  %v51 = vld [vmem:[%s1 + $0x88] sm:$0xf]
  %v52 = vld [vmem:[%s1 + $0x8c] sm:$0xf]
  %v53 = vld [vmem:[%s1 + $0x90] sm:$0xf]
  %v54 = vld [vmem:[%s1 + $0x94] sm:$0xf]
  %v55 = vld [vmem:[%s1 + $0x98] sm:$0xf]
  %v56 = vld [vmem:[%s1 + $0x9c] sm:$0xf]
  %v57 = vld [vmem:[%s1 + $0xa0] sm:$0xf]
  %v58 = vld [vmem:[%s1 + $0xa4] sm:$0xf]
  %v59 = vld [vmem:[%s1 + $0xa8] sm:$0xf]
  %v60 = vld [vmem:[%s1 + $0xac] sm:$0xf]
  %v61 = vld [vmem:[%s1 + $0xb0] sm:$0xf]
  %v62 = vld [vmem:[%s1 + $0xb4] sm:$0xf]
  %v63 = vld [vmem:[%s1 + $0xb8] sm:$0xf]
  %v64 = vld [vmem:[%s1 + $0xbc] sm:$0xf]
  %v65 = vld [vmem:[%s1 + $0xc0] sm:$0xf]
  %v66 = vld [vmem:[%s1 + $0xc4] sm:$0xf]
  %v67 = vld [vmem:[%s1 + $0xc8] sm:$0xf]
  %v68 = vld [vmem:[%s1 + $0xcc] sm:$0xf]
  %v69 = vld [vmem:[%s1 + $0xd0] sm:$0xf]
  %v70 = vld [vmem:[%s1 + $0xd4] sm:$0xf]
  %v71 = vld [vmem:[%s2] sm:$0x1]
  %v73 = vperm.slane %v71, 0
  %v77 = vunpack.c.l.b16 %v15
  %v78 = vunpack.c.h.b16 %v15
  %v79 = vunpack.c.l.b16 %v16
  %v80 = vunpack.c.h.b16 %v16
  %v81 = vpack.c.b16 %v77, %v77
  %v82 = vpack.c.b16 %v78, %v78
  %v83 = vpack.c.b16 %v79, %v79
  %v84 = vpack.c.b16 %v80, %v80
  %v142 = vunpack.c.l.b16 %v17
  %v143 = vunpack.c.l.b16 %v18
  %v144 = vunpack.c.l.b16 %v19
  %v145 = vunpack.c.l.b16 %v20
  %v146 = vunpack.c.l.b16 %v21
  %v147 = vunpack.c.l.b16 %v22
  %v148 = vunpack.c.l.b16 %v23
  %v149 = vunpack.c.l.b16 %v24
  %v150 = vunpack.c.l.b16 %v25
  %v151 = vunpack.c.l.b16 %v26
  %v152 = vunpack.c.l.b16 %v27
  %v153 = vunpack.c.l.b16 %v28
  %v154 = vunpack.c.l.b16 %v29
  %v155 = vunpack.c.l.b16 %v30
  %v156 = vunpack.c.l.b16 %v31
  %v157 = vunpack.c.l.b16 %v32
  %v158 = vunpack.c.l.b16 %v33
  %v159 = vunpack.c.l.b16 %v34
  %v160 = vunpack.c.l.b16 %v35
  %v161 = vunpack.c.l.b16 %v36
  %v162 = vunpack.c.l.b16 %v37
  %v163 = vunpack.c.l.b16 %v38
  %v164 = vunpack.c.l.b16 %v39
  %v165 = vunpack.c.l.b16 %v40
  %v166 = vunpack.c.l.b16 %v41
  %v167 = vunpack.c.l.b16 %v42
  %v168 = vunpack.c.l.b16 %v43
  %v169 = vunpack.c.l.b16 %v44
  %v170 = vunpack.c.l.b16 %v45
  %v171 = vunpack.c.l.b16 %v46
  %v172 = vunpack.c.l.b16 %v47
  %v173 = vunpack.c.l.b16 %v48
  %v174 = vunpack.c.l.b16 %v49
  %v175 = vunpack.c.l.b16 %v50
  %v176 = vunpack.c.l.b16 %v51
  %v177 = vunpack.c.l.b16 %v52
  %v178 = vunpack.c.l.b16 %v53
  %v179 = vunpack.c.l.b16 %v54
  %v180 = vunpack.c.l.b16 %v55
  %v181 = vunpack.c.l.b16 %v56
  %v182 = vunpack.c.l.b16 %v57
  %v183 = vunpack.c.l.b16 %v58
  %v184 = vunpack.c.l.b16 %v59
  %v185 = vunpack.c.l.b16 %v60
  %v186 = vunpack.c.l.b16 %v61
  %v187 = vunpack.c.l.b16 %v62
  %v188 = vunpack.c.l.b16 %v63
  %v189 = vunpack.c.l.b16 %v64
  %v190 = vunpack.c.l.b16 %v65
  %v191 = vunpack.c.l.b16 %v66
  %v192 = vunpack.c.l.b16 %v67
  %v193 = vunpack.c.l.b16 %v68
  %v194 = vunpack.c.l.b16 %v69
  %v195 = vunpack.c.l.b16 %v70
  %v196 = vpack.c.b16 %v143, %v142
  %v197 = vpack.c.b16 %v145, %v144
  %v198 = vpack.c.b16 %v147, %v146
  %v199 = vpack.c.b16 %v149, %v148
  %v200 = vpack.c.b16 %v151, %v150
  %v201 = vpack.c.b16 %v153, %v152
  %v202 = vpack.c.b16 %v155, %v154
  %v203 = vpack.c.b16 %v157, %v156
  %v204 = vpack.c.b16 %v159, %v158
  %v205 = vpack.c.b16 %v161, %v160
  %v206 = vpack.c.b16 %v163, %v162
  %v207 = vpack.c.b16 %v165, %v164
  %v208 = vpack.c.b16 %v167, %v166
  %v209 = vpack.c.b16 %v169, %v168
  %v210 = vpack.c.b16 %v171, %v170
  %v211 = vpack.c.b16 %v173, %v172
  %v212 = vpack.c.b16 %v175, %v174
  %v213 = vpack.c.b16 %v177, %v176
  %v214 = vpack.c.b16 %v179, %v178
  %v215 = vpack.c.b16 %v181, %v180
  %v216 = vpack.c.b16 %v183, %v182
  %v217 = vpack.c.b16 %v185, %v184
  %v218 = vpack.c.b16 %v187, %v186
  %v219 = vpack.c.b16 %v189, %v188
  %v220 = vpack.c.b16 %v191, %v190
  %v221 = vpack.c.b16 %v193, %v192
  %v222 = vpack.c.b16 %v195, %v194
  %vm250 = vcmask 392192
  %v252 = vsel %vm250, %v84, 0
  %254 = vmatpush.bf16.msra.mxu0 %v203
  %255 = vmatpush.bf16.msra.mxu0 %v202
  %256 = vmatpush.bf16.msra.mxu0 %v201
  %257 = vmatpush.bf16.msra.mxu0 %v200
  %258 = vmatpush.bf16.msra.mxu0 %v199
  %259 = vmatpush.bf16.msra.mxu0 %v198
  %260 = vmatpush.bf16.msra.mxu0 %v197
  %261 = vmatpush.bf16.msra.mxu0 %v196
  %262 = vmatmul.bf16.gmra.mxu0 %v81
  %v263 = vpop.f32.mrf.mxu0
  %v264 = vadd.f32 %v73, %v263
  %v265 = vpop.f32.mrf.mxu0
  %266 = vdwg.mxu0
  %267 = vmatpush.bf16.msra.mxu0 %v211
  %268 = vmatpush.bf16.msra.mxu0 %v210
  %269 = vmatpush.bf16.msra.mxu0 %v209
  %270 = vmatpush.bf16.msra.mxu0 %v208
  %271 = vmatpush.bf16.msra.mxu0 %v207
  %272 = vmatpush.bf16.msra.mxu0 %v206
  %273 = vmatpush.bf16.msra.mxu0 %v205
  %274 = vmatpush.bf16.msra.mxu0 %v204
  %275 = vmatmul.bf16.gmra.mxu0 %v82
  %v276 = vpop.f32.mrf.mxu0
  %v277 = vadd.f32 %v264, %v276
  %v278 = vpop.f32.mrf.mxu0
  %279 = vdwg.mxu0
  %280 = vmatpush.bf16.msra.mxu0 %v219
  %281 = vmatpush.bf16.msra.mxu0 %v218
  %282 = vmatpush.bf16.msra.mxu0 %v217
  %283 = vmatpush.bf16.msra.mxu0 %v216
  %284 = vmatpush.bf16.msra.mxu0 %v215
  %285 = vmatpush.bf16.msra.mxu0 %v214
  %286 = vmatpush.bf16.msra.mxu0 %v213
  %287 = vmatpush.bf16.msra.mxu0 %v212
  %288 = vmatmul.bf16.gmra.mxu0 %v83
  %v289 = vpop.f32.mrf.mxu0
  %v290 = vadd.f32 %v277, %v289
  %v291 = vpop.f32.mrf.mxu0
  %292 = vdwg.mxu0
  %293 = vmatpush.bf16.msra.mxu0 0
  %294 = vmatpush.bf16.msra.mxu0 0
  %295 = vmatpush.bf16.msra.mxu0 0
  %296 = vmatpush.bf16.msra.mxu0 0
  %297 = vmatpush.bf16.msra.mxu0 0
  %298 = vmatpush.bf16.msra.mxu0 %v222
  %299 = vmatpush.bf16.msra.mxu0 %v221
  %300 = vmatpush.bf16.msra.mxu0 %v220
  %301 = vmatmul.bf16.gmra.mxu0 %v252
  %v302 = vpop.f32.mrf.mxu0
  %v303 = vadd.f32 %v290, %v302
  %v304 = vpop.f32.mrf.mxu0
  %305 = vdwg.mxu0
  %v306 = vmax.f32 %v303, 0.0
  %307 = vst [vmem:[%s3] sm:$0xff] %v306
  // Predicated region
  $region14: #{vae_forward.9} parent=0 // pred_check
    _
  $region15: #{vae_forward.9} parent=0 // pred_check_branch
    %309 = sbr.rel (0) target = $region17
  $region16: #{vae_forward.9} parent=0 // pred_region
    _
  $region17: #{vae_forward.9} parent=0 // pred_fallthru
    _
  // Predicated region
  $region18: #{vae_forward.9} parent=0 // pred_check
    _
  $region19: #{vae_forward.9} parent=0 // pred_check_branch
    %311 = sbr.rel (0) target = $region21
  $region20: #{vae_forward.9} parent=0 // pred_region
    _
  $region21: #{vae_forward.9} parent=0 // pred_fallthru
    _

// kernel: vae_forward.10
$region0: #{vae_forward.10}
  #allocation0 [shape = 'u32[]', space=smem, size = 0x4, offset = 0x4, fixed_abs, tag = 'smem constant byte address 0x4 - core index']
  #allocation1 [shape = 'u32[72,128]{1,0:T(1,128)}', space=vmem, size = 0x9000, scoped, tag = 'internal scratch']
  %s0 = inlined_call_operand.vmem [shape: bf16[32,216], index: 0, kind: input, shape index: {}]
  %s1 = inlined_call_operand.vmem [shape: bf16[216,128], index: 1, kind: input, shape index: {}]
  %s2 = inlined_call_operand.vmem [shape: f32[1,128], index: 2, kind: input, shape index: {}]
  %s3 = inlined_call_operand.vmem [shape: f32[32,128], index: 3, kind: output, shape index: {}]
  %s4 = sld [smem:[#allocation0]]
  $region22: #{vae_forward.10} parent=0
    _
  %s6 = ssub.s32 1, %s4
  %s7 = scalar_select 0, %s6, %s4
  // Predicated region
  $region2: #{vae_forward.10} parent=0 // pred_check
    _
  $region3: #{vae_forward.10} parent=0 // pred_check_branch
    %9 = sbr.rel (0) target = $region5
  $region4: #{vae_forward.10} parent=0 // pred_region
    _
  $region5: #{vae_forward.10} parent=0 // pred_fallthru
    _
  // Predicated region
  $region6: #{vae_forward.10} parent=0 // pred_check
    _
  $region7: #{vae_forward.10} parent=0 // pred_check_branch
    %11 = sbr.rel (0) target = $region9
  $region8: #{vae_forward.10} parent=0 // pred_region
    _
  $region9: #{vae_forward.10} parent=0 // pred_fallthru
    _
  // Predicated region
  $region10: #{vae_forward.10} parent=0 // pred_check
    _
  $region11: #{vae_forward.10} parent=0 // pred_check_branch
    %13 = sbr.rel (0) target = $region13
  $region12: #{vae_forward.10} parent=0 // pred_region
    _
  $region13: #{vae_forward.10} parent=0 // pred_fallthru
    _
  %v15 = vld [vmem:[%s0] sm:$0xff]
  %v16 = vld [vmem:[%s0 + $0x8] sm:$0xff]
  %v17 = vld [vmem:[%s0 + $0x10] sm:$0xff]
  %v18 = vld [vmem:[%s0 + $0x18] sm:$0xff]
  %v19 = vld [vmem:[%s1] sm:$0xf]
  %v20 = vld [vmem:[%s1 + $0x4] sm:$0xf]
  %v21 = vld [vmem:[%s1 + $0x8] sm:$0xf]
  %v22 = vld [vmem:[%s1 + $0xc] sm:$0xf]
  %v23 = vld [vmem:[%s1 + $0x10] sm:$0xf]
  %v24 = vld [vmem:[%s1 + $0x14] sm:$0xf]
  %v25 = vld [vmem:[%s1 + $0x18] sm:$0xf]
  %v26 = vld [vmem:[%s1 + $0x1c] sm:$0xf]
  %v27 = vld [vmem:[%s1 + $0x20] sm:$0xf]
  %v28 = vld [vmem:[%s1 + $0x24] sm:$0xf]
  %v29 = vld [vmem:[%s1 + $0x28] sm:$0xf]
  %v30 = vld [vmem:[%s1 + $0x2c] sm:$0xf]
  %v31 = vld [vmem:[%s1 + $0x30] sm:$0xf]
  %v32 = vld [vmem:[%s1 + $0x34] sm:$0xf]
  %v33 = vld [vmem:[%s1 + $0x38] sm:$0xf]
  %v34 = vld [vmem:[%s1 + $0x3c] sm:$0xf]
  %v35 = vld [vmem:[%s1 + $0x40] sm:$0xf]
  %v36 = vld [vmem:[%s1 + $0x44] sm:$0xf]
  %v37 = vld [vmem:[%s1 + $0x48] sm:$0xf]
  %v38 = vld [vmem:[%s1 + $0x4c] sm:$0xf]
  %v39 = vld [vmem:[%s1 + $0x50] sm:$0xf]
  %v40 = vld [vmem:[%s1 + $0x54] sm:$0xf]
  %v41 = vld [vmem:[%s1 + $0x58] sm:$0xf]
  %v42 = vld [vmem:[%s1 + $0x5c] sm:$0xf]
  %v43 = vld [vmem:[%s1 + $0x60] sm:$0xf]
  %v44 = vld [vmem:[%s1 + $0x64] sm:$0xf]
  %v45 = vld [vmem:[%s1 + $0x68] sm:$0xf]
  %v46 = vld [vmem:[%s2] sm:$0x1]
  %v48 = vperm.slane %v46, 0
  %v54 = vunpack.c.l.b16 %v15
  %v55 = vunpack.c.h.b16 %v15
  %v56 = vunpack.c.l.b16 %v16
  %v57 = vunpack.c.h.b16 %v16
  %v58 = vunpack.c.l.b16 %v17
  %v59 = vunpack.c.h.b16 %v17
  %v60 = vunpack.c.l.b16 %v18
  %v61 = vunpack.c.h.b16 %v18
  %v62 = vpack.c.b16 %v56, %v54
  %v63 = vpack.c.b16 %v57, %v55
  %v64 = vpack.c.b16 %v60, %v58
  %v65 = vpack.c.b16 %v61, %v59
  %v95 = vunpack.c.l.b16 %v19
  %v96 = vunpack.c.l.b16 %v20
  %v97 = vunpack.c.l.b16 %v21
  %v98 = vunpack.c.l.b16 %v22
  %v99 = vunpack.c.l.b16 %v23
  %v100 = vunpack.c.l.b16 %v24
  %v101 = vunpack.c.l.b16 %v25
  %v102 = vunpack.c.l.b16 %v26
  %v103 = vunpack.c.l.b16 %v27
  %v104 = vunpack.c.l.b16 %v28
  %v105 = vunpack.c.l.b16 %v29
  %v106 = vunpack.c.l.b16 %v30
  %v107 = vunpack.c.l.b16 %v31
  %v108 = vunpack.c.l.b16 %v32
  %v109 = vunpack.c.l.b16 %v33
  %v110 = vunpack.c.l.b16 %v34
  %v111 = vunpack.c.l.b16 %v35
  %v112 = vunpack.c.l.b16 %v36
  %v113 = vunpack.c.l.b16 %v37
  %v114 = vunpack.c.l.b16 %v38
  %v115 = vunpack.c.l.b16 %v39
  %v116 = vunpack.c.l.b16 %v40
  %v117 = vunpack.c.l.b16 %v41
  %v118 = vunpack.c.l.b16 %v42
  %v119 = vunpack.c.l.b16 %v43
  %v120 = vunpack.c.l.b16 %v44
  %v121 = vunpack.c.l.b16 %v45
  %v122 = vpack.c.b16 %v96, %v95
  %v123 = vpack.c.b16 %v98, %v97
  %v124 = vpack.c.b16 %v100, %v99
  %v125 = vpack.c.b16 %v102, %v101
  %v126 = vpack.c.b16 %v104, %v103
  %v127 = vpack.c.b16 %v106, %v105
  %v128 = vpack.c.b16 %v108, %v107
  %v129 = vpack.c.b16 %v110, %v109
  %v130 = vpack.c.b16 %v112, %v111
  %v131 = vpack.c.b16 %v114, %v113
  %v132 = vpack.c.b16 %v116, %v115
  %v133 = vpack.c.b16 %v118, %v117
  %v134 = vpack.c.b16 %v120, %v119
  %v135 = vpack.c.b16 %v121, %v121
  %vm149 = vcmask 719872
  %v151 = vsel %vm149, %v63, 0
  %v154 = vsel %vm149, %v65, 0
  %vm156 = vcmask 1043456
  %v158 = vsel %vm156, %v135, 0
  %160 = vmatpush.bf16.msra.mxu0 %v129
  %161 = vmatpush.bf16.msra.mxu0 %v128
  %162 = vmatpush.bf16.msra.mxu0 %v127
  %163 = vmatpush.bf16.msra.mxu0 %v126
  %164 = vmatpush.bf16.msra.mxu0 %v125
  %165 = vmatpush.bf16.msra.mxu0 %v124
  %166 = vmatpush.bf16.msra.mxu0 %v123
  %167 = vmatpush.bf16.msra.mxu0 %v122
  %168 = vmatmul.bf16.gmra.mxu0 %v62
  %v169 = vpop.f32.mrf.mxu0
  %v170 = vadd.f32 %v48, %v169
  %v171 = vpop.f32.mrf.mxu0
  %v172 = vadd.f32 %v48, %v171
  %173 = vmatmul.bf16.gmra.mxu0 %v64
  %v174 = vpop.f32.mrf.mxu0
  %v175 = vadd.f32 %v48, %v174
  %v176 = vpop.f32.mrf.mxu0
  %v177 = vadd.f32 %v48, %v176
  %178 = vdwg.mxu0
  %179 = vmatpush.bf16.msra.mxu0 0
  %180 = vmatpush.bf16.msra.mxu0 0
  %181 = vmatpush.bf16.msra.mxu0 %v158
  %182 = vmatpush.bf16.msra.mxu0 %v134
  %183 = vmatpush.bf16.msra.mxu0 %v133
  %184 = vmatpush.bf16.msra.mxu0 %v132
  %185 = vmatpush.bf16.msra.mxu0 %v131
  %186 = vmatpush.bf16.msra.mxu0 %v130
  %187 = vmatmul.bf16.gmra.mxu0 %v151
  %v188 = vpop.f32.mrf.mxu0
  %v189 = vadd.f32 %v170, %v188
  %v190 = vpop.f32.mrf.mxu0
  %v191 = vadd.f32 %v172, %v190
  %192 = vmatmul.bf16.gmra.mxu0 %v154
  %v193 = vpop.f32.mrf.mxu0
  %v194 = vadd.f32 %v175, %v193
  %v195 = vpop.f32.mrf.mxu0
  %v196 = vadd.f32 %v177, %v195
  %197 = vdwg.mxu0
  %v198 = vmax.f32 %v189, 0.0
  %v199 = vmax.f32 %v191, 0.0
  %v200 = vmax.f32 %v194, 0.0
  %v201 = vmax.f32 %v196, 0.0
  %202 = vst [vmem:[%s3] sm:$0xff] %v198
  %203 = vst [vmem:[%s3 + $0x8] sm:$0xff] %v199
  %204 = vst [vmem:[%s3 + $0x10] sm:$0xff] %v200
  %205 = vst [vmem:[%s3 + $0x18] sm:$0xff] %v201
  // Predicated region
  $region14: #{vae_forward.10} parent=0 // pred_check
    _
  $region15: #{vae_forward.10} parent=0 // pred_check_branch
    %207 = sbr.rel (0) target = $region17
  $region16: #{vae_forward.10} parent=0 // pred_region
    _
  $region17: #{vae_forward.10} parent=0 // pred_fallthru
    _
  // Predicated region
  $region18: #{vae_forward.10} parent=0 // pred_check
    _
  $region19: #{vae_forward.10} parent=0 // pred_check_branch
    %209 = sbr.rel (0) target = $region21
  $region20: #{vae_forward.10} parent=0 // pred_region
    _
  $region21: #{vae_forward.10} parent=0 // pred_fallthru
    _

// kernel: vae_forward.11
$region0: #{vae_forward.11}
  #allocation0 [shape = 'u32[]', space=smem, size = 0x4, offset = 0x4, fixed_abs, tag = 'smem constant byte address 0x4 - core index']
  #allocation1 [shape = 'u32[72,128]{1,0:T(1,128)}', space=vmem, size = 0x9000, scoped, tag = 'internal scratch']
  %s0 = inlined_call_operand.vmem [shape: bf16[128,108], index: 0, kind: input, shape index: {}]
  %s1 = inlined_call_operand.vmem [shape: bf16[108,128], index: 1, kind: input, shape index: {}]
  %s2 = inlined_call_operand.vmem [shape: f32[1,128], index: 2, kind: input, shape index: {}]
  %s3 = inlined_call_operand.vmem [shape: f32[128,128], index: 3, kind: output, shape index: {}]
  %s4 = sld [smem:[#allocation0]]
  $region22: #{vae_forward.11} parent=0
    _
  %s6 = ssub.s32 1, %s4
  %s7 = scalar_select 0, %s6, %s4
  // Predicated region
  $region2: #{vae_forward.11} parent=0 // pred_check
    _
  $region3: #{vae_forward.11} parent=0 // pred_check_branch
    %9 = sbr.rel (0) target = $region5
  $region4: #{vae_forward.11} parent=0 // pred_region
    _
  $region5: #{vae_forward.11} parent=0 // pred_fallthru
    _
  // Predicated region
  $region6: #{vae_forward.11} parent=0 // pred_check
    _
  $region7: #{vae_forward.11} parent=0 // pred_check_branch
    %11 = sbr.rel (0) target = $region9
  $region8: #{vae_forward.11} parent=0 // pred_region
    _
  $region9: #{vae_forward.11} parent=0 // pred_fallthru
    _
  // Predicated region
  $region10: #{vae_forward.11} parent=0 // pred_check
    _
  $region11: #{vae_forward.11} parent=0 // pred_check_branch
    %13 = sbr.rel (0) target = $region13
  $region12: #{vae_forward.11} parent=0 // pred_region
    _
  $region13: #{vae_forward.11} parent=0 // pred_fallthru
    _
  %v15 = vld [vmem:[%s0] sm:$0xf]
  %v16 = vld [vmem:[%s0 + $0x4] sm:$0xf]
  %v17 = vld [vmem:[%s0 + $0x8] sm:$0xf]
  %v18 = vld [vmem:[%s0 + $0xc] sm:$0xf]
  %v19 = vld [vmem:[%s0 + $0x10] sm:$0xf]
  %v20 = vld [vmem:[%s0 + $0x14] sm:$0xf]
  %v21 = vld [vmem:[%s0 + $0x18] sm:$0xf]
  %v22 = vld [vmem:[%s0 + $0x1c] sm:$0xf]
  %v23 = vld [vmem:[%s0 + $0x20] sm:$0xf]
  %v24 = vld [vmem:[%s0 + $0x24] sm:$0xf]
  %v25 = vld [vmem:[%s0 + $0x28] sm:$0xf]
  %v26 = vld [vmem:[%s0 + $0x2c] sm:$0xf]
  %v27 = vld [vmem:[%s0 + $0x30] sm:$0xf]
  %v28 = vld [vmem:[%s0 + $0x34] sm:$0xf]
  %v29 = vld [vmem:[%s0 + $0x38] sm:$0xf]
  %v30 = vld [vmem:[%s0 + $0x3c] sm:$0xf]
  %v31 = vld [vmem:[%s1] sm:$0xf]
  %v32 = vld [vmem:[%s1 + $0x4] sm:$0xf]
  %v33 = vld [vmem:[%s1 + $0x8] sm:$0xf]
  %v34 = vld [vmem:[%s1 + $0xc] sm:$0xf]
  %v35 = vld [vmem:[%s1 + $0x10] sm:$0xf]
  %v36 = vld [vmem:[%s1 + $0x14] sm:$0xf]
  %v37 = vld [vmem:[%s1 + $0x18] sm:$0xf]
  %v38 = vld [vmem:[%s1 + $0x1c] sm:$0xf]
  %v39 = vld [vmem:[%s1 + $0x20] sm:$0xf]
  %v40 = vld [vmem:[%s1 + $0x24] sm:$0xf]
  %v41 = vld [vmem:[%s1 + $0x28] sm:$0xf]
  %v42 = vld [vmem:[%s1 + $0x2c] sm:$0xf]
  %v43 = vld [vmem:[%s1 + $0x30] sm:$0xf]
  %v44 = vld [vmem:[%s1 + $0x34] sm:$0x3]
  %v45 = vld [vmem:[%s2] sm:$0x1]
  %v47 = vperm.slane %v45, 0
  %v65 = vunpack.c.l.b16 %v15
  %v66 = vunpack.c.l.b16 %v16
  %v67 = vunpack.c.l.b16 %v17
  %v68 = vunpack.c.l.b16 %v18
  %v69 = vunpack.c.l.b16 %v19
  %v70 = vunpack.c.l.b16 %v20
  %v71 = vunpack.c.l.b16 %v21
  %v72 = vunpack.c.l.b16 %v22
  %v73 = vunpack.c.l.b16 %v23
  %v74 = vunpack.c.l.b16 %v24
  %v75 = vunpack.c.l.b16 %v25
  %v76 = vunpack.c.l.b16 %v26
  %v77 = vunpack.c.l.b16 %v27
  %v78 = vunpack.c.l.b16 %v28
  %v79 = vunpack.c.l.b16 %v29
  %v80 = vunpack.c.l.b16 %v30
  %v81 = vpack.c.b16 %v66, %v65
  %v82 = vpack.c.b16 %v68, %v67
  %v83 = vpack.c.b16 %v70, %v69
  %v84 = vpack.c.b16 %v72, %v71
  %v85 = vpack.c.b16 %v74, %v73
  %v86 = vpack.c.b16 %v76, %v75
  %v87 = vpack.c.b16 %v78, %v77
  %v88 = vpack.c.b16 %v80, %v79
  %v103 = vunpack.c.l.b16 %v31
  %v104 = vunpack.c.l.b16 %v32
  %v105 = vunpack.c.l.b16 %v33
  %v106 = vunpack.c.l.b16 %v34
  %v107 = vunpack.c.l.b16 %v35
  %v108 = vunpack.c.l.b16 %v36
  %v109 = vunpack.c.l.b16 %v37
  %v110 = vunpack.c.l.b16 %v38
  %v111 = vunpack.c.l.b16 %v39
  %v112 = vunpack.c.l.b16 %v40
  %v113 = vunpack.c.l.b16 %v41
  %v114 = vunpack.c.l.b16 %v42
  %v115 = vunpack.c.l.b16 %v43
  %v116 = vunpack.c.l.b16 %v44
  %v117 = vpack.c.b16 %v104, %v103
  %v118 = vpack.c.b16 %v106, %v105
  %v119 = vpack.c.b16 %v108, %v107
  %v120 = vpack.c.b16 %v110, %v109
  %v121 = vpack.c.b16 %v112, %v111
  %v122 = vpack.c.b16 %v114, %v113
  %v123 = vpack.c.b16 %v116, %v115
  %vm130 = vcmask 883712
  %v132 = vsel %vm130, %v81, 0
  %v135 = vsel %vm130, %v82, 0
  %v138 = vsel %vm130, %v83, 0
  %v141 = vsel %vm130, %v84, 0
  %v144 = vsel %vm130, %v85, 0
  %v147 = vsel %vm130, %v86, 0
  %v150 = vsel %vm130, %v87, 0
  %v153 = vsel %vm130, %v88, 0
  %vm155 = vcmask 1045504
  %v157 = vsel %vm155, %v123, 0
  %159 = vmatpush.bf16.msra.mxu0 0
  %160 = vmatpush.bf16.msra.mxu0 %v157
  %161 = vmatpush.bf16.msra.mxu0 %v122
  %162 = vmatpush.bf16.msra.mxu0 %v121
  %163 = vmatpush.bf16.msra.mxu0 %v120
  %164 = vmatpush.bf16.msra.mxu0 %v119
  %165 = vmatpush.bf16.msra.mxu0 %v118
  %166 = vmatpush.bf16.msra.mxu0 %v117
  %167 = vmatmul.bf16.gmra.mxu0 %v132
  %v168 = vpop.f32.mrf.mxu0
  %v169 = vadd.f32 %v47, %v168
  %v170 = vpop.f32.mrf.mxu0
  %v171 = vadd.f32 %v47, %v170
  %172 = vmatmul.bf16.gmra.mxu0 %v135
  %v173 = vpop.f32.mrf.mxu0
  %v174 = vadd.f32 %v47, %v173
  %v175 = vpop.f32.mrf.mxu0
  %v176 = vadd.f32 %v47, %v175
  %177 = vmatmul.bf16.gmra.mxu0 %v138
  %v178 = vpop.f32.mrf.mxu0
  %v179 = vadd.f32 %v47, %v178
  %v180 = vpop.f32.mrf.mxu0
  %v181 = vadd.f32 %v47, %v180
  %182 = vmatmul.bf16.gmra.mxu0 %v141
  %v183 = vpop.f32.mrf.mxu0
  %v184 = vadd.f32 %v47, %v183
  %v185 = vpop.f32.mrf.mxu0
  %v186 = vadd.f32 %v47, %v185
  %187 = vmatmul.bf16.gmra.mxu0 %v144
  %v188 = vpop.f32.mrf.mxu0
  %v189 = vadd.f32 %v47, %v188
  %v190 = vpop.f32.mrf.mxu0
  %v191 = vadd.f32 %v47, %v190
  %192 = vmatmul.bf16.gmra.mxu0 %v147
  %v193 = vpop.f32.mrf.mxu0
  %v194 = vadd.f32 %v47, %v193
  %v195 = vpop.f32.mrf.mxu0
  %v196 = vadd.f32 %v47, %v195
  %197 = vmatmul.bf16.gmra.mxu0 %v150
  %v198 = vpop.f32.mrf.mxu0
  %v199 = vadd.f32 %v47, %v198
  %v200 = vpop.f32.mrf.mxu0
  %v201 = vadd.f32 %v47, %v200
  %202 = vmatmul.bf16.gmra.mxu0 %v153
  %v203 = vpop.f32.mrf.mxu0
  %v204 = vadd.f32 %v47, %v203
  %v205 = vpop.f32.mrf.mxu0
  %v206 = vadd.f32 %v47, %v205
  %207 = vdwg.mxu0
  %v208 = vtanh.pop %v169
  %v209 = vtanh.pop %v171
  %v210 = vtanh.pop %v174
  %v211 = vtanh.pop %v176
  %v212 = vtanh.pop %v179
  %v213 = vtanh.pop %v181
  %v214 = vtanh.pop %v184
  %v215 = vtanh.pop %v186
  %v216 = vtanh.pop %v189
  %v217 = vtanh.pop %v191
  %v218 = vtanh.pop %v194
  %v219 = vtanh.pop %v196
  %v220 = vtanh.pop %v199
  %v221 = vtanh.pop %v201
  %v222 = vtanh.pop %v204
  %v223 = vtanh.pop %v206
  %224 = vst [vmem:[%s3] sm:$0xff] %v208
  %225 = vst [vmem:[%s3 + $0x8] sm:$0xff] %v209
  %226 = vst [vmem:[%s3 + $0x10] sm:$0xff] %v210
  %227 = vst [vmem:[%s3 + $0x18] sm:$0xff] %v211
  %228 = vst [vmem:[%s3 + $0x20] sm:$0xff] %v212
  %229 = vst [vmem:[%s3 + $0x28] sm:$0xff] %v213
  %230 = vst [vmem:[%s3 + $0x30] sm:$0xff] %v214
  %231 = vst [vmem:[%s3 + $0x38] sm:$0xff] %v215
  %232 = vst [vmem:[%s3 + $0x40] sm:$0xff] %v216
  %233 = vst [vmem:[%s3 + $0x48] sm:$0xff] %v217
  %234 = vst [vmem:[%s3 + $0x50] sm:$0xff] %v218
  %235 = vst [vmem:[%s3 + $0x58] sm:$0xff] %v219
  %236 = vst [vmem:[%s3 + $0x60] sm:$0xff] %v220
  %237 = vst [vmem:[%s3 + $0x68] sm:$0xff] %v221
  %238 = vst [vmem:[%s3 + $0x70] sm:$0xff] %v222
  %239 = vst [vmem:[%s3 + $0x78] sm:$0xff] %v223
  // Predicated region
  $region14: #{vae_forward.11} parent=0 // pred_check
    _
  $region15: #{vae_forward.11} parent=0 // pred_check_branch
    %241 = sbr.rel (0) target = $region17
  $region16: #{vae_forward.11} parent=0 // pred_region
    _
  $region17: #{vae_forward.11} parent=0 // pred_fallthru
    _
  // Predicated region
  $region18: #{vae_forward.11} parent=0 // pred_check
    _
  $region19: #{vae_forward.11} parent=0 // pred_check_branch
    %243 = sbr.rel (0) target = $region21
  $region20: #{vae_forward.11} parent=0 // pred_region
    _
  $region21: #{vae_forward.11} parent=0 // pred_fallthru
    _

</llo_original>
